<compile_context>
chip_gen: v6e
topology: v6e:2x2x1
jax: 0.10.0
libtpu: 0.0.40
codegen_flags: <defaults>
</compile_context>

<pallas_src>
import jax
import jax.numpy as jnp
from jax import lax
from jax.experimental import pallas as pl
from jax.experimental.pallas import tpu as pltpu


# ---------------------------------------------------------------------------
# Fused kernel: maxpool2x2 -> pad -> conv3x3+bias+ReLU -> pad -> conv3x3+bias+ReLU
# ---------------------------------------------------------------------------
def _down_kernel(x_ref, w1_ref, b1_ref, w2_ref, b2_ref, o_ref,
                 xp1_ref, xp2_ref):
    """One batch element per grid step.

    x_ref  : (1, Hh, 2, Wh, 2, Cin)  pooling windows pre-split (wrapper reshape)
    w1_ref : (9*Cin,  Cout)          BN-scale-folded weights, (kh, kw, cin) rows
    w2_ref : (9*Cout, Cout)
    b*_ref : (1, Cout)               BN-folded biases
    o_ref  : (1, Hh*Wh, Cout)
    xp*_ref: VMEM scratch holding zero-padded conv inputs (padding=1)
    """
    Hh = x_ref.shape[1]
    Wh = x_ref.shape[3]
    Cout = w1_ref.shape[1]

    # ---- 2x2 max pool (stride 2), fused into the input read ----
    x = x_ref[0]                                    # (Hh, 2, Wh, 2, Cin)
    pooled = jnp.max(jnp.max(x, axis=1), axis=2)    # (Hh, Wh, Cin)

    def conv3x3_bias_relu(xpad_ref, interior, w_ref, b_ref):
        # zero-pad (padding=1) into VMEM scratch; only the interior is rewritten
        xpad_ref[...] = jnp.zeros_like(xpad_ref)
        xpad_ref[1:1 + Hh, 1:1 + Wh, :] = interior
        xp = xpad_ref[...]                          # (Hh+2, Wh+2, C)
        # im2col: fold all 9 taps into the contraction axis -> single MXU matmul
        taps = [xp[kh:kh + Hh, kw:kw + Wh, :]
                for kh in range(3) for kw in range(3)]
        patches = jnp.concatenate(taps, axis=-1)    # (Hh, Wh, 9*C)
        patches = patches.reshape(Hh * Wh, patches.shape[-1])
        acc = jnp.dot(patches, w_ref[...],
                      preferred_element_type=jnp.float32)    # (Hh*Wh, Cout)
        return jnp.maximum(acc + b_ref[...], 0.0)   # folded-BN bias + ReLU

    y1 = conv3x3_bias_relu(xp1_ref, pooled, w1_ref, b1_ref)
    y2 = conv3x3_bias_relu(xp2_ref, y1.reshape(Hh, Wh, Cout), w2_ref, b2_ref)
    o_ref[0] = y2.astype(o_ref.dtype)


# ---------------------------------------------------------------------------
# Host-side BN fold (glue): scale into weights, bias into a single add.
# ---------------------------------------------------------------------------
def fold_bn_into_conv(w_hwio, conv_b, gamma, beta, mean, var, eps=1e-5):
    scale = gamma / jnp.sqrt(var + eps)                  # (Cout,)
    w_f = w_hwio * scale[None, None, None, :]            # fold scale into conv
    b_f = scale * (conv_b - mean) + beta
    return w_f, b_f


def down_forward(x_nchw, p):
    """Full `down` forward. x_nchw: (N, Cin, H, W) -> (N, Cout, H/2, W/2)."""
    x = jnp.transpose(x_nchw, (0, 2, 3, 1))              # NCHW -> NHWC (glue)
    N, H, W, Cin = x.shape
    Hh, Wh = H // 2, W // 2
    Cout = p["w1"].shape[-1]

    w1f, b1f = fold_bn_into_conv(p["w1"], p["b1"], p["g1"], p["be1"],
                                 p["m1"], p["v1"])
    w2f, b2f = fold_bn_into_conv(p["w2"], p["b2"], p["g2"], p["be2"],
                                 p["m2"], p["v2"])
    w1f = w1f.reshape(9 * Cin, Cout)                     # (kh, kw, cin) order
    w2f = w2f.reshape(9 * Cout, Cout)

    # contiguous split of pooling windows -- free metadata reshape in XLA
    xr = x.reshape(N, Hh, 2, Wh, 2, Cin)

    out = pl.pallas_call(
        _down_kernel,
        out_shape=jax.ShapeDtypeStruct((N, Hh * Wh, Cout), jnp.float32),
        grid_spec=pltpu.PrefetchScalarGridSpec(
            num_scalar_prefetch=0,
            grid=(N,),
            in_specs=[
                pl.BlockSpec((1, Hh, 2, Wh, 2, Cin),
                             lambda b: (b, 0, 0, 0, 0, 0)),
                pl.BlockSpec((9 * Cin, Cout), lambda b: (0, 0)),
                pl.BlockSpec((1, Cout), lambda b: (0, 0)),
                pl.BlockSpec((9 * Cout, Cout), lambda b: (0, 0)),
                pl.BlockSpec((1, Cout), lambda b: (0, 0)),
            ],
            out_specs=pl.BlockSpec((1, Hh * Wh, Cout), lambda b: (b, 0, 0)),
            scratch_shapes=[
                pltpu.VMEM((Hh + 2, Wh + 2, Cin), jnp.float32),
                pltpu.VMEM((Hh + 2, Wh + 2, Cout), jnp.float32),
            ],
        ),
        compiler_params=pltpu.CompilerParams(
            dimension_semantics=("parallel",)),
    )(xr, w1f, b1f.reshape(1, Cout), w2f, b2f.reshape(1, Cout))

    out = out.reshape(N, Hh, Wh, Cout)
    return jnp.transpose(out, (0, 3, 1, 2))              # NHWC -> NCHW (glue)


# ---------------------------------------------------------------------------
# Deterministic parameter setup.
# ---------------------------------------------------------------------------
def make_params(key, in_ch, out_ch):
    ks = jax.random.split(key, 8)
    p = {}
    p["w1"] = jax.random.normal(ks[0], (3, 3, in_ch, out_ch), jnp.float32) * 0.1
    p["b1"] = jax.random.normal(ks[1], (out_ch,), jnp.float32) * 0.1
    p["g1"] = 1.0 + 0.1 * jax.random.normal(ks[2], (out_ch,), jnp.float32)
    p["be1"] = 0.1 * jax.random.normal(ks[3], (out_ch,), jnp.float32)
    p["m1"] = jnp.zeros((out_ch,), jnp.float32)
    p["v1"] = jnp.ones((out_ch,), jnp.float32)
    p["w2"] = jax.random.normal(ks[4], (3, 3, out_ch, out_ch), jnp.float32) * 0.1
    p["b2"] = jax.random.normal(ks[5], (out_ch,), jnp.float32) * 0.1
    p["g2"] = 1.0 + 0.1 * jax.random.normal(ks[6], (out_ch,), jnp.float32)
    p["be2"] = 0.1 * jax.random.normal(ks[7], (out_ch,), jnp.float32)
    p["m2"] = jnp.zeros((out_ch,), jnp.float32)
    p["v2"] = jnp.ones((out_ch,), jnp.float32)
    return p


# ---------------------------------------------------------------------------
# Pure-JAX reference (same eval-mode BN fold) for the correctness check.
# ---------------------------------------------------------------------------
def _ref_down(x_nchw, p):
    x = jnp.transpose(x_nchw, (0, 2, 3, 1))
    N, H, W, C = x.shape
    x = x.reshape(N, H // 2, 2, W // 2, 2, C).max(axis=(2, 4))

    def cbr(x, w, cb, g, be, m, v, eps=1e-5):
        y = lax.conv_general_dilated(x, w, (1, 1), ((1, 1), (1, 1)),
                                     dimension_numbers=("NHWC", "HWIO", "NHWC"))
        s = g / jnp.sqrt(v + eps)
        b = s * (cb - m) + be
        return jnp.maximum(y * s + b, 0.0)

    x = cbr(x, p["w1"], p["b1"], p["g1"], p["be1"], p["m1"], p["v1"])
    x = cbr(x, p["w2"], p["b2"], p["g2"], p["be2"], p["m2"], p["v2"])
    return jnp.transpose(x, (0, 3, 1, 2))


if __name__ == "__main__":
    N, in_ch, out_ch, H, W = 2, 4, 8, 16, 16
    key = jax.random.PRNGKey(0)
    kx, kp = jax.random.split(key)
    x = jax.random.normal(kx, (N, in_ch, H, W), jnp.float32)   # PyTorch NCHW
    params = make_params(kp, in_ch, out_ch)

    out = jax.block_until_ready(down_forward(x, params))
    ref = jax.block_until_ready(_ref_down(x, params))

    assert out.shape == (N, out_ch, H // 2, W // 2), out.shape
    assert jnp.allclose(out, ref, atol=1e-4, rtol=1e-4), float(
        jnp.max(jnp.abs(out - ref)))
    print("KERNEL_OK")
</pallas_src>

<mosaic_0001>
module attributes {stable_mosaic.version = 11 : i64} {
  func.func @_down_kernel(%arg0: i32, %arg1: memref<1x8x2x8x2x4xf32, #tpu.memory_space<vmem>>, %arg2: memref<36x8xf32, #tpu.memory_space<vmem>>, %arg3: memref<1x8xf32, #tpu.memory_space<vmem>>, %arg4: memref<72x8xf32, #tpu.memory_space<vmem>>, %arg5: memref<1x8xf32, #tpu.memory_space<vmem>>, %arg6: memref<1x64x8xf32, #tpu.memory_space<vmem>>, %arg7: memref<10x10x4xf32, #tpu.memory_space<vmem>>, %arg8: memref<10x10x8xf32, #tpu.memory_space<vmem>>) attributes {dimension_semantics = [#tpu.dimension_semantics<parallel>], iteration_bounds = array<i64: 2>, scalar_prefetch = 0 : i64, scratch_operands = 2 : i64, tpu.core_type = #tpu.core_type<tc>, window_params = [{transform_indices = @transform_0, window_bounds = array<i64: 1, 8, 2, 8, 2, 4>}, {pipeline_mode = #tpu.pipeline_mode<synchronous>, transform_indices = @transform_1, window_bounds = array<i64: 36, 8>}, {pipeline_mode = #tpu.pipeline_mode<synchronous>, transform_indices = @transform_2, window_bounds = array<i64: 1, 8>}, {pipeline_mode = #tpu.pipeline_mode<synchronous>, transform_indices = @transform_3, window_bounds = array<i64: 72, 8>}, {pipeline_mode = #tpu.pipeline_mode<synchronous>, transform_indices = @transform_4, window_bounds = array<i64: 1, 8>}, {transform_indices = @transform_5, window_bounds = array<i64: 1, 64, 8>}]} {
    %c0 = arith.constant 0 : index
    %c0_0 = arith.constant 0 : index
    %c0_1 = arith.constant 0 : index
    %c0_2 = arith.constant 0 : index
    %c0_3 = arith.constant 0 : index
    %c0_4 = arith.constant 0 : index
    %0 = vector.load %arg1[%c0, %c0_0, %c0_1, %c0_2, %c0_3, %c0_4] : memref<1x8x2x8x2x4xf32, #tpu.memory_space<vmem>>, vector<1x8x2x8x2x4xf32>
    %1 = vector.shape_cast %0 : vector<1x8x2x8x2x4xf32> to vector<8x2x8x2x4xf32>
    %cst = arith.constant dense<0xFF800000> : vector<8x8x2x4xf32>
    %2 = vector.multi_reduction <maximumf>, %1, %cst [1] : vector<8x2x8x2x4xf32> to vector<8x8x2x4xf32>
    %cst_5 = arith.constant dense<0xFF800000> : vector<8x8x4xf32>
    %3 = vector.multi_reduction <maximumf>, %2, %cst_5 [2] : vector<8x8x2x4xf32> to vector<8x8x4xf32>
    %cst_6 = arith.constant 0.000000e+00 : f32
    %4 = vector.broadcast %cst_6 : f32 to vector<10x10x4xf32>
    %c0_7 = arith.constant 0 : index
    %c0_8 = arith.constant 0 : index
    %c0_9 = arith.constant 0 : index
    %5 = vector.load %arg7[%c0_7, %c0_8, %c0_9] : memref<10x10x4xf32, #tpu.memory_space<vmem>>, vector<10x10x4xf32>
    tpu.vector_store %arg7[%c0_7, %c0_8, %c0_9], %4 {strides = array<i32>} : memref<10x10x4xf32, #tpu.memory_space<vmem>>, vector<10x10x4xf32>,
    %c1 = arith.constant 1 : index
    %c1_10 = arith.constant 1 : index
    %c0_11 = arith.constant 0 : index
    %6 = vector.load %arg7[%c1, %c1_10, %c0_11] : memref<10x10x4xf32, #tpu.memory_space<vmem>>, vector<8x8x4xf32>
    tpu.vector_store %arg7[%c1, %c1_10, %c0_11], %3 {strides = array<i32>} : memref<10x10x4xf32, #tpu.memory_space<vmem>>, vector<8x8x4xf32>,
    %c0_12 = arith.constant 0 : index
    %c0_13 = arith.constant 0 : index
    %c0_14 = arith.constant 0 : index
    %7 = vector.load %arg7[%c0_12, %c0_13, %c0_14] : memref<10x10x4xf32, #tpu.memory_space<vmem>>, vector<10x10x4xf32>
    %8 = vector.extract_strided_slice %7 {offsets = [0, 0, 0], sizes = [8, 8, 4], strides = [1, 1, 1]} : vector<10x10x4xf32> to vector<8x8x4xf32>
    %9 = vector.extract_strided_slice %7 {offsets = [0, 1, 0], sizes = [8, 8, 4], strides = [1, 1, 1]} : vector<10x10x4xf32> to vector<8x8x4xf32>
    %10 = vector.extract_strided_slice %7 {offsets = [0, 2, 0], sizes = [8, 8, 4], strides = [1, 1, 1]} : vector<10x10x4xf32> to vector<8x8x4xf32>
    %11 = vector.extract_strided_slice %7 {offsets = [1, 0, 0], sizes = [8, 8, 4], strides = [1, 1, 1]} : vector<10x10x4xf32> to vector<8x8x4xf32>
    %12 = vector.extract_strided_slice %7 {offsets = [1, 1, 0], sizes = [8, 8, 4], strides = [1, 1, 1]} : vector<10x10x4xf32> to vector<8x8x4xf32>
    %13 = vector.extract_strided_slice %7 {offsets = [1, 2, 0], sizes = [8, 8, 4], strides = [1, 1, 1]} : vector<10x10x4xf32> to vector<8x8x4xf32>
    %14 = vector.extract_strided_slice %7 {offsets = [2, 0, 0], sizes = [8, 8, 4], strides = [1, 1, 1]} : vector<10x10x4xf32> to vector<8x8x4xf32>
    %15 = vector.extract_strided_slice %7 {offsets = [2, 1, 0], sizes = [8, 8, 4], strides = [1, 1, 1]} : vector<10x10x4xf32> to vector<8x8x4xf32>
    %16 = vector.extract_strided_slice %7 {offsets = [2, 2, 0], sizes = [8, 8, 4], strides = [1, 1, 1]} : vector<10x10x4xf32> to vector<8x8x4xf32>
    %17 = tpu.concatenate %8, %9, %10, %11, %12, %13, %14, %15, %16 in 2 : vector<8x8x4xf32>, vector<8x8x4xf32>, vector<8x8x4xf32>, vector<8x8x4xf32>, vector<8x8x4xf32>, vector<8x8x4xf32>, vector<8x8x4xf32>, vector<8x8x4xf32>, vector<8x8x4xf32> -> vector<8x8x36xf32>
    %18 = vector.shape_cast %17 : vector<8x8x36xf32> to vector<64x36xf32>
    %c0_15 = arith.constant 0 : index
    %c0_16 = arith.constant 0 : index
    %19 = vector.load %arg2[%c0_15, %c0_16] : memref<36x8xf32, #tpu.memory_space<vmem>>, vector<36x8xf32>
    %cst_17 = arith.constant dense<0.000000e+00> : vector<64x8xf32>
    %20 = tpu.matmul %18, %19, %cst_17 {dimension_numbers = #tpu.dot_dimension_numbers<[1], [0], [0], [1], [0, 0, 1, 1], [], []>} : vector<64x36xf32>, vector<36x8xf32>, vector<64x8xf32> -> vector<64x8xf32>
    %c0_18 = arith.constant 0 : index
    %c0_19 = arith.constant 0 : index
    %21 = vector.load %arg3[%c0_18, %c0_19] : memref<1x8xf32, #tpu.memory_space<vmem>>, vector<1x8xf32>
    %22 = vector.broadcast %21 : vector<1x8xf32> to vector<64x8xf32>
    %23 = arith.addf %20, %22 : vector<64x8xf32>
    %cst_20 = arith.constant 0.000000e+00 : f32
    %24 = vector.broadcast %cst_20 : f32 to vector<64x8xf32>
    %25 = arith.maximumf %23, %24 : vector<64x8xf32>
    %26 = vector.shape_cast %25 : vector<64x8xf32> to vector<8x8x8xf32>
    %cst_21 = arith.constant 0.000000e+00 : f32
    %27 = vector.broadcast %cst_21 : f32 to vector<10x10x8xf32>
    %c0_22 = arith.constant 0 : index
    %c0_23 = arith.constant 0 : index
    %c0_24 = arith.constant 0 : index
    %28 = vector.load %arg8[%c0_22, %c0_23, %c0_24] : memref<10x10x8xf32, #tpu.memory_space<vmem>>, vector<10x10x8xf32>
    tpu.vector_store %arg8[%c0_22, %c0_23, %c0_24], %27 {strides = array<i32>} : memref<10x10x8xf32, #tpu.memory_space<vmem>>, vector<10x10x8xf32>,
    %c1_25 = arith.constant 1 : index
    %c1_26 = arith.constant 1 : index
    %c0_27 = arith.constant 0 : index
    %29 = vector.load %arg8[%c1_25, %c1_26, %c0_27] : memref<10x10x8xf32, #tpu.memory_space<vmem>>, vector<8x8x8xf32>
    tpu.vector_store %arg8[%c1_25, %c1_26, %c0_27], %26 {strides = array<i32>} : memref<10x10x8xf32, #tpu.memory_space<vmem>>, vector<8x8x8xf32>,
    %c0_28 = arith.constant 0 : index
    %c0_29 = arith.constant 0 : index
    %c0_30 = arith.constant 0 : index
    %30 = vector.load %arg8[%c0_28, %c0_29, %c0_30] : memref<10x10x8xf32, #tpu.memory_space<vmem>>, vector<10x10x8xf32>
    %31 = vector.extract_strided_slice %30 {offsets = [0, 0, 0], sizes = [8, 8, 8], strides = [1, 1, 1]} : vector<10x10x8xf32> to vector<8x8x8xf32>
    %32 = vector.extract_strided_slice %30 {offsets = [0, 1, 0], sizes = [8, 8, 8], strides = [1, 1, 1]} : vector<10x10x8xf32> to vector<8x8x8xf32>
    %33 = vector.extract_strided_slice %30 {offsets = [0, 2, 0], sizes = [8, 8, 8], strides = [1, 1, 1]} : vector<10x10x8xf32> to vector<8x8x8xf32>
    %34 = vector.extract_strided_slice %30 {offsets = [1, 0, 0], sizes = [8, 8, 8], strides = [1, 1, 1]} : vector<10x10x8xf32> to vector<8x8x8xf32>
    %35 = vector.extract_strided_slice %30 {offsets = [1, 1, 0], sizes = [8, 8, 8], strides = [1, 1, 1]} : vector<10x10x8xf32> to vector<8x8x8xf32>
    %36 = vector.extract_strided_slice %30 {offsets = [1, 2, 0], sizes = [8, 8, 8], strides = [1, 1, 1]} : vector<10x10x8xf32> to vector<8x8x8xf32>
    %37 = vector.extract_strided_slice %30 {offsets = [2, 0, 0], sizes = [8, 8, 8], strides = [1, 1, 1]} : vector<10x10x8xf32> to vector<8x8x8xf32>
    %38 = vector.extract_strided_slice %30 {offsets = [2, 1, 0], sizes = [8, 8, 8], strides = [1, 1, 1]} : vector<10x10x8xf32> to vector<8x8x8xf32>
    %39 = vector.extract_strided_slice %30 {offsets = [2, 2, 0], sizes = [8, 8, 8], strides = [1, 1, 1]} : vector<10x10x8xf32> to vector<8x8x8xf32>
    %40 = tpu.concatenate %31, %32, %33, %34, %35, %36, %37, %38, %39 in 2 : vector<8x8x8xf32>, vector<8x8x8xf32>, vector<8x8x8xf32>, vector<8x8x8xf32>, vector<8x8x8xf32>, vector<8x8x8xf32>, vector<8x8x8xf32>, vector<8x8x8xf32>, vector<8x8x8xf32> -> vector<8x8x72xf32>
    %41 = vector.shape_cast %40 : vector<8x8x72xf32> to vector<64x72xf32>
    %c0_31 = arith.constant 0 : index
    %c0_32 = arith.constant 0 : index
    %42 = vector.load %arg4[%c0_31, %c0_32] : memref<72x8xf32, #tpu.memory_space<vmem>>, vector<72x8xf32>
    %cst_33 = arith.constant dense<0.000000e+00> : vector<64x8xf32>
    %43 = tpu.matmul %41, %42, %cst_33 {dimension_numbers = #tpu.dot_dimension_numbers<[1], [0], [0], [1], [0, 0, 1, 1], [], []>} : vector<64x72xf32>, vector<72x8xf32>, vector<64x8xf32> -> vector<64x8xf32>
    %c0_34 = arith.constant 0 : index
    %c0_35 = arith.constant 0 : index
    %44 = vector.load %arg5[%c0_34, %c0_35] : memref<1x8xf32, #tpu.memory_space<vmem>>, vector<1x8xf32>
    %45 = vector.broadcast %44 : vector<1x8xf32> to vector<64x8xf32>
    %46 = arith.addf %43, %45 : vector<64x8xf32>
    %cst_36 = arith.constant 0.000000e+00 : f32
    %47 = vector.broadcast %cst_36 : f32 to vector<64x8xf32>
    %48 = arith.maximumf %46, %47 : vector<64x8xf32>
    %c0_37 = arith.constant 0 : index
    %c0_38 = arith.constant 0 : index
    %c0_39 = arith.constant 0 : index
    %49 = vector.load %arg6[%c0_37, %c0_38, %c0_39] : memref<1x64x8xf32, #tpu.memory_space<vmem>>, vector<1x64x8xf32>
    %50 = vector.shape_cast %49 : vector<1x64x8xf32> to vector<64x8xf32>
    %51 = vector.shape_cast %48 : vector<64x8xf32> to vector<1x64x8xf32>
    tpu.vector_store %arg6[%c0_37, %c0_38, %c0_39], %51 {strides = array<i32>} : memref<1x64x8xf32, #tpu.memory_space<vmem>>, vector<1x64x8xf32>,
    return
  }
  func.func @transform_0(%arg0: i32) -> (i32, i32, i32, i32, i32, i32) {
    %c0_i32 = arith.constant 0 : i32
    %c0_i32_0 = arith.constant 0 : i32
    %c0_i32_1 = arith.constant 0 : i32
    %c0_i32_2 = arith.constant 0 : i32
    %c0_i32_3 = arith.constant 0 : i32
    %c0_i32_4 = arith.constant 0 : i32
    return %arg0, %c0_i32, %c0_i32_0, %c0_i32_1, %c0_i32_2, %c0_i32_3 : i32, i32, i32, i32, i32, i32
  }
  func.func @transform_1(%arg0: i32) -> (i32, i32) {
    %c0_i32 = arith.constant 0 : i32
    %c0_i32_0 = arith.constant 0 : i32
    %c0_i32_1 = arith.constant 0 : i32
    return %c0_i32, %c0_i32_0 : i32, i32
  }
  func.func @transform_2(%arg0: i32) -> (i32, i32) {
    %c0_i32 = arith.constant 0 : i32
    %c0_i32_0 = arith.constant 0 : i32
    %c0_i32_1 = arith.constant 0 : i32
    return %c0_i32, %c0_i32_0 : i32, i32
  }
  func.func @transform_3(%arg0: i32) -> (i32, i32) {
    %c0_i32 = arith.constant 0 : i32
    %c0_i32_0 = arith.constant 0 : i32
    %c0_i32_1 = arith.constant 0 : i32
    return %c0_i32, %c0_i32_0 : i32, i32
  }
  func.func @transform_4(%arg0: i32) -> (i32, i32) {
    %c0_i32 = arith.constant 0 : i32
    %c0_i32_0 = arith.constant 0 : i32
    %c0_i32_1 = arith.constant 0 : i32
    return %c0_i32, %c0_i32_0 : i32, i32
  }
  func.func @transform_5(%arg0: i32) -> (i32, i32, i32) {
    %c0_i32 = arith.constant 0 : i32
    %c0_i32_0 = arith.constant 0 : i32
    %c0_i32_1 = arith.constant 0 : i32
    return %arg0, %c0_i32, %c0_i32_0 : i32, i32, i32
  }
}

</mosaic_0001>

<llo_original>
// kernel: tpu_custom_call.1
$region0: #{tpu_custom_call.1}
  #allocation0 [shape = 'u32[]', space=smem, size = 0x4, offset = 0x4, fixed_abs, tag = 'smem constant byte address 0x4 - core index']
  #allocation1 [shape = 'u32[144,128]{1,0:T(1,128)}', space=vmem, size = 0x12000, scoped, tag = 'internal scratch']
  #allocation2 [shape = 'f32[10,10,4]{2,1,0:T(8,128)}', space=vmem, size = 0x14000, scoped, tag = 'scratch operand']
  #allocation3 [shape = 'f32[10,10,8]{2,1,0:T(8,128)}', space=vmem, size = 0x14000, scoped, tag = 'scratch operand']
  %s0 = inlined_call_operand.vmem [shape: f32[2,8,2,8,2,4], index: 0, kind: input, shape index: {}]
  %s1 = inlined_call_operand.vmem [shape: f32[36,8], index: 1, kind: input, shape index: {}]
  %s2 = inlined_call_operand.vmem [shape: f32[1,8], index: 2, kind: input, shape index: {}]
  %s3 = inlined_call_operand.vmem [shape: f32[72,8], index: 3, kind: input, shape index: {}]
  %s4 = inlined_call_operand.vmem [shape: f32[1,8], index: 4, kind: input, shape index: {}]
  %s5 = inlined_call_operand.vmem [shape: f32[2,64,8], index: 5, kind: output, shape index: {}]
  %s6 = sld [smem:[#allocation0]]
  $region53: #{tpu_custom_call.1} parent=0
    _
  %s8 = ssub.s32 1, %s6
  %s9 = scalar_select 0, %s8, %s6
  loop: start=0, step=1, limit=4
  $region2: #{tpu_custom_call.1} parent=0 // loop_pre_header
    _
  $region3: #{tpu_custom_call.1} parent=0 // loop_header
    %s11 = sphi 0, %s15
    %p12 = scmp.ge.s32.totalorder %s11, 4
    %s21 = sphi 0, %s23
    %s24 = sphi 0, %s21
    %s25 = sphi 0, %s24
    %s41 = sphi 0, %s25
    %s45 = sphi 0, %s45
    %s47 = sphi 0, %s45
    %s48 = sphi 0, %s47
    %s62 = sphi 0, %s48
    %s66 = sphi 0, %s66
    %s68 = sphi 0, %s66
    %s69 = sphi 0, %s68
    %s83 = sphi 0, %s69
    %s87 = sphi 0, %s87
    %s89 = sphi 0, %s87
    %s90 = sphi 0, %s89
    %s104 = sphi 0, %s90
    %s108 = sphi 0, %s108
    %s110 = sphi 0, %s108
    %s111 = sphi 0, %s110
    %s125 = sphi 0, %s111
    %s131 = sphi 0, %s133
    %s134 = sphi 0, %s131
    %s135 = sphi 0, %s134
    %s151 = sphi 0, %s135
  $region4: #{tpu_custom_call.1} parent=0 // loop_header_branch
    %14 = sbr.rel (%p12) target = $region8
  $region5: #{tpu_custom_call.1} parent=0 // loop_body
    %s16 = ssub.s32 %s11, 1
    %s17 = ssub.s32 %s11, 2
    %s18 = sadd.s32 %s11, 1
    %s19 = ssub.s32 %s11, %s18
    %p20 = scmp.eq.s32.totalorder %s19, 0
    %s22 = sadd.s32 %s21, 1
    %s23 = scalar_select %p20, %s21, %s22
    %p26 = pneg %p20
    %p27 = scmp.eq.s32.totalorder %s11, 1
    %p28 = por %p26, %p27
    %p29 = scmp.ne.s32.totalorder %s21, %s24
    %p30 = scmp.eq.s32.totalorder %s11, 0
    %p31 = por %p29, %p30
    %p32 = scmp.ne.s32.totalorder %s21, %s24
    %p33 = scmp.eq.s32.totalorder %s16, 1
    %p34 = por %p32, %p33
    %p35 = scmp.ne.s32.totalorder %s24, %s25
    %p36 = scmp.eq.s32.totalorder %s16, 0
    %p37 = por %p35, %p36
    %p38 = scmp.ne.s32.totalorder %s24, %s25
    %p39 = scmp.eq.s32.totalorder %s17, 1
    %p40 = por %p38, %p39
    %p42 = scmp.ne.s32.totalorder %s25, %s41
    %p43 = scmp.eq.s32.totalorder %s17, 0
    %p44 = por %p42, %p43
    %s46 = sadd.s32 %s45, 1
    %p49 = scmp.eq.s32.totalorder %s11, 1
    %p50 = scmp.ne.s32.totalorder %s45, %s47
    %p51 = scmp.eq.s32.totalorder %s11, 0
    %p52 = por %p50, %p51
    %p53 = scmp.ne.s32.totalorder %s45, %s47
    %p54 = scmp.eq.s32.totalorder %s16, 1
    %p55 = por %p53, %p54
    %p56 = scmp.ne.s32.totalorder %s47, %s48
    %p57 = scmp.eq.s32.totalorder %s16, 0
    %p58 = por %p56, %p57
    %p59 = scmp.ne.s32.totalorder %s47, %s48
    %p60 = scmp.eq.s32.totalorder %s17, 1
    %p61 = por %p59, %p60
    %p63 = scmp.ne.s32.totalorder %s48, %s62
    %p64 = scmp.eq.s32.totalorder %s17, 0
    %p65 = por %p63, %p64
    %s67 = sadd.s32 %s66, 1
    %p70 = scmp.eq.s32.totalorder %s11, 1
    %p71 = scmp.ne.s32.totalorder %s66, %s68
    %p72 = scmp.eq.s32.totalorder %s11, 0
    %p73 = por %p71, %p72
    %p74 = scmp.ne.s32.totalorder %s66, %s68
    %p75 = scmp.eq.s32.totalorder %s16, 1
    %p76 = por %p74, %p75
    %p77 = scmp.ne.s32.totalorder %s68, %s69
    %p78 = scmp.eq.s32.totalorder %s16, 0
    %p79 = por %p77, %p78
    %p80 = scmp.ne.s32.totalorder %s68, %s69
    %p81 = scmp.eq.s32.totalorder %s17, 1
    %p82 = por %p80, %p81
    %p84 = scmp.ne.s32.totalorder %s69, %s83
    %p85 = scmp.eq.s32.totalorder %s17, 0
    %p86 = por %p84, %p85
    %s88 = sadd.s32 %s87, 1
    %p91 = scmp.eq.s32.totalorder %s11, 1
    %p92 = scmp.ne.s32.totalorder %s87, %s89
    %p93 = scmp.eq.s32.totalorder %s11, 0
    %p94 = por %p92, %p93
    %p95 = scmp.ne.s32.totalorder %s87, %s89
    %p96 = scmp.eq.s32.totalorder %s16, 1
    %p97 = por %p95, %p96
    %p98 = scmp.ne.s32.totalorder %s89, %s90
    %p99 = scmp.eq.s32.totalorder %s16, 0
    %p100 = por %p98, %p99
    %p101 = scmp.ne.s32.totalorder %s89, %s90
    %p102 = scmp.eq.s32.totalorder %s17, 1
    %p103 = por %p101, %p102
    %p105 = scmp.ne.s32.totalorder %s90, %s104
    %p106 = scmp.eq.s32.totalorder %s17, 0
    %p107 = por %p105, %p106
    %s109 = sadd.s32 %s108, 1
    %p112 = scmp.eq.s32.totalorder %s11, 1
    %p113 = scmp.ne.s32.totalorder %s108, %s110
    %p114 = scmp.eq.s32.totalorder %s11, 0
    %p115 = por %p113, %p114
    %p116 = scmp.ne.s32.totalorder %s108, %s110
    %p117 = scmp.eq.s32.totalorder %s16, 1
    %p118 = por %p116, %p117
    %p119 = scmp.ne.s32.totalorder %s110, %s111
    %p120 = scmp.eq.s32.totalorder %s16, 0
    %p121 = por %p119, %p120
    %p122 = scmp.ne.s32.totalorder %s110, %s111
    %p123 = scmp.eq.s32.totalorder %s17, 1
    %p124 = por %p122, %p123
    %p126 = scmp.ne.s32.totalorder %s111, %s125
    %p127 = scmp.eq.s32.totalorder %s17, 0
    %p128 = por %p126, %p127
    %s129 = ssub.s32 %s11, %s18
    %p130 = scmp.eq.s32.totalorder %s129, 0
    %s132 = sadd.s32 %s131, 1
    %s133 = scalar_select %p130, %s131, %s132
    %p136 = pneg %p130
    %p137 = scmp.eq.s32.totalorder %s11, 1
    %p138 = por %p136, %p137
    %p139 = scmp.ne.s32.totalorder %s131, %s134
    %p140 = scmp.eq.s32.totalorder %s11, 0
    %p141 = por %p139, %p140
    %p142 = scmp.ne.s32.totalorder %s131, %s134
    %p143 = scmp.eq.s32.totalorder %s16, 1
    %p144 = por %p142, %p143
    %p145 = scmp.ne.s32.totalorder %s134, %s135
    %p146 = scmp.eq.s32.totalorder %s16, 0
    %p147 = por %p145, %p146
    %p148 = scmp.ne.s32.totalorder %s134, %s135
    %p149 = scmp.eq.s32.totalorder %s17, 1
    %p150 = por %p148, %p149
    %p152 = scmp.ne.s32.totalorder %s135, %s151
    %p153 = scmp.eq.s32.totalorder %s17, 0
    %p154 = por %p152, %p153
    %p155 = scmp.le.s32.totalorder 1, %s11
    %p156 = scmp.lt.s32.totalorder %s11, 3
    %p157 = pnand %p155, %p156
    %p158 = pneg %p157
    // Predicated region
    $region9: #{tpu_custom_call.1} parent=5 // pred_check
      _
    $region10: #{tpu_custom_call.1} parent=5 // pred_check_branch
      %160 = sbr.rel (%p157) target = $region12
    $region11: #{tpu_custom_call.1} parent=5 // pred_region
      %s161 = ssub.s32 %s11, 1
      // Predicated region
      $region13: #{tpu_custom_call.1} parent=11 // pred_check
        %p162 = pneg %p58
      $region14: #{tpu_custom_call.1} parent=11 // pred_check_branch
        %164 = sbr.rel (%p162) target = $region16
      $region15: #{tpu_custom_call.1} parent=11 // pred_region
        _
      $region16: #{tpu_custom_call.1} parent=11 // pred_fallthru
        _
      // Predicated region
      $region17: #{tpu_custom_call.1} parent=11 // pred_check
        %p165 = pneg %p79
      $region18: #{tpu_custom_call.1} parent=11 // pred_check_branch
        %167 = sbr.rel (%p165) target = $region20
      $region19: #{tpu_custom_call.1} parent=11 // pred_region
        _
      $region20: #{tpu_custom_call.1} parent=11 // pred_fallthru
        _
      // Predicated region
      $region21: #{tpu_custom_call.1} parent=11 // pred_check
        %p168 = pneg %p100
      $region22: #{tpu_custom_call.1} parent=11 // pred_check_branch
        %170 = sbr.rel (%p168) target = $region24
      $region23: #{tpu_custom_call.1} parent=11 // pred_region
        _
      $region24: #{tpu_custom_call.1} parent=11 // pred_fallthru
        _
      // Predicated region
      $region25: #{tpu_custom_call.1} parent=11 // pred_check
        %p171 = pneg %p121
      $region26: #{tpu_custom_call.1} parent=11 // pred_check_branch
        %173 = sbr.rel (%p171) target = $region28
      $region27: #{tpu_custom_call.1} parent=11 // pred_region
        _
      $region28: #{tpu_custom_call.1} parent=11 // pred_fallthru
        _
    $region12: #{tpu_custom_call.1} parent=5 // pred_fallthru
      _
    %p174 = scmp.lt.s32.totalorder %s11, 2
    // Predicated region
    $region29: #{tpu_custom_call.1} parent=5 // pred_check
      %p175 = pneg %p174
    $region30: #{tpu_custom_call.1} parent=5 // pred_check_branch
      %177 = sbr.rel (%p175) target = $region32
    $region31: #{tpu_custom_call.1} parent=5 // pred_region
      // Predicated region
      $region33: #{tpu_custom_call.1} parent=31 // pred_check
        %p178 = pneg %p31
      $region34: #{tpu_custom_call.1} parent=31 // pred_check_branch
        %180 = sbr.rel (%p178) target = $region36
      $region35: #{tpu_custom_call.1} parent=31 // pred_region
        %p181 = scmp.lt.s32.totalorder %s11, 1
        %s182 = scalar_select %p181, %s11, 1
        %s183 = smul.addr %s182, 128
        %s184 = smul.addr %s183, 2
        %s185 = scalar_lea.vmem %s0, %s184
      $region36: #{tpu_custom_call.1} parent=31 // pred_fallthru
        _
    $region32: #{tpu_custom_call.1} parent=5 // pred_fallthru
      _
    %p186 = scmp.le.s32.totalorder 1, %s11
    %p187 = scmp.lt.s32.totalorder %s11, 3
    %p188 = pnand %p186, %p187
    %p189 = pneg %p188
    // Predicated region
    $region37: #{tpu_custom_call.1} parent=5 // pred_check
      _
    $region38: #{tpu_custom_call.1} parent=5 // pred_check_branch
      %191 = sbr.rel (%p188) target = $region40
    $region39: #{tpu_custom_call.1} parent=5 // pred_region
      %s192 = ssub.s32 %s11, 1
      %p193 = scmp.lt.s32.totalorder %s16, 1
      %s194 = scalar_select %p193, %s16, 1
      %s195 = smul.addr %s194, 128
      %s196 = smul.addr %s195, 2
      %s197 = scalar_lea.vmem %s0, %s196
      %p198 = pneg %p37
      %p199 = pneg %p34
      %p200 = pneg %p58
      %p201 = pneg %p55
      %p202 = pneg %p79
      %p203 = pneg %p76
      %p204 = pneg %p100
      %p205 = pneg %p97
      %p206 = pneg %p121
      %p207 = pneg %p118
      %p208 = pneg %p147
      %p209 = pneg %p144
      %p210 = scmp.lt.s32.totalorder %s16, 1
      %s211 = scalar_select %p210, %s16, 1
      %s212 = smul.addr %s211, 8
      %s213 = smul.addr %s212, 8
      %s214 = scalar_lea.vmem %s5, %s213
      %p215 = scmp.lt.s32.totalorder %s16, 1
      %s216 = scalar_select %p215, %s16, 1
      %s217 = smul.addr %s216, 128
      %s218 = smul.addr %s217, 2
      %s219 = scalar_lea.vmem %s0, %s218
      %p220 = scmp.lt.s32.totalorder %s16, 1
      %s221 = scalar_select %p220, %s16, 1
      %s222 = smul.addr %s221, 8
      %s223 = smul.addr %s222, 8
      %s224 = scalar_lea.vmem %s5, %s223
      %v225 = vld [vmem:[%s219] sm:$0x3]
      %v226 = vld [vmem:[%s219 + $0x2] sm:$0x3]
      %v227 = vld [vmem:[%s219 + $0x4] sm:$0x3]
      %v228 = vld [vmem:[%s219 + $0x6] sm:$0x3]
      %v229 = vld [vmem:[%s219 + $0x8] sm:$0x3]
      %v230 = vld [vmem:[%s219 + $0xa] sm:$0x3]
      %v231 = vld [vmem:[%s219 + $0xc] sm:$0x3]
      %v232 = vld [vmem:[%s219 + $0xe] sm:$0x3]
      %v233 = vld [vmem:[%s219 + $0x10] sm:$0x3]
      %v234 = vld [vmem:[%s219 + $0x12] sm:$0x3]
      %v235 = vld [vmem:[%s219 + $0x14] sm:$0x3]
      %v236 = vld [vmem:[%s219 + $0x16] sm:$0x3]
      %v237 = vld [vmem:[%s219 + $0x18] sm:$0x3]
      %v238 = vld [vmem:[%s219 + $0x1a] sm:$0x3]
      %v239 = vld [vmem:[%s219 + $0x1c] sm:$0x3]
      %v240 = vld [vmem:[%s219 + $0x1e] sm:$0x3]
      %v241 = vld [vmem:[%s219 + $0x20] sm:$0x3]
      %v242 = vld [vmem:[%s219 + $0x22] sm:$0x3]
      %v243 = vld [vmem:[%s219 + $0x24] sm:$0x3]
      %v244 = vld [vmem:[%s219 + $0x26] sm:$0x3]
      %v245 = vld [vmem:[%s219 + $0x28] sm:$0x3]
      %v246 = vld [vmem:[%s219 + $0x2a] sm:$0x3]
      %v247 = vld [vmem:[%s219 + $0x2c] sm:$0x3]
      %v248 = vld [vmem:[%s219 + $0x2e] sm:$0x3]
      %v249 = vld [vmem:[%s219 + $0x30] sm:$0x3]
      %v250 = vld [vmem:[%s219 + $0x32] sm:$0x3]
      %v251 = vld [vmem:[%s219 + $0x34] sm:$0x3]
      %v252 = vld [vmem:[%s219 + $0x36] sm:$0x3]
      %v253 = vld [vmem:[%s219 + $0x38] sm:$0x3]
      %v254 = vld [vmem:[%s219 + $0x3a] sm:$0x3]
      %v255 = vld [vmem:[%s219 + $0x3c] sm:$0x3]
      %v256 = vld [vmem:[%s219 + $0x3e] sm:$0x3]
      %v257 = vld [vmem:[%s219 + $0x40] sm:$0x3]
      %v258 = vld [vmem:[%s219 + $0x42] sm:$0x3]
      %v259 = vld [vmem:[%s219 + $0x44] sm:$0x3]
      %v260 = vld [vmem:[%s219 + $0x46] sm:$0x3]
      %v261 = vld [vmem:[%s219 + $0x48] sm:$0x3]
      %v262 = vld [vmem:[%s219 + $0x4a] sm:$0x3]
      %v263 = vld [vmem:[%s219 + $0x4c] sm:$0x3]
      %v264 = vld [vmem:[%s219 + $0x4e] sm:$0x3]
      %v265 = vld [vmem:[%s219 + $0x50] sm:$0x3]
      %v266 = vld [vmem:[%s219 + $0x52] sm:$0x3]
      %v267 = vld [vmem:[%s219 + $0x54] sm:$0x3]
      %v268 = vld [vmem:[%s219 + $0x56] sm:$0x3]
      %v269 = vld [vmem:[%s219 + $0x58] sm:$0x3]
      %v270 = vld [vmem:[%s219 + $0x5a] sm:$0x3]
      %v271 = vld [vmem:[%s219 + $0x5c] sm:$0x3]
      %v272 = vld [vmem:[%s219 + $0x5e] sm:$0x3]
      %v273 = vld [vmem:[%s219 + $0x60] sm:$0x3]
      %v274 = vld [vmem:[%s219 + $0x62] sm:$0x3]
      %v275 = vld [vmem:[%s219 + $0x64] sm:$0x3]
      %v276 = vld [vmem:[%s219 + $0x66] sm:$0x3]
      %v277 = vld [vmem:[%s219 + $0x68] sm:$0x3]
      %v278 = vld [vmem:[%s219 + $0x6a] sm:$0x3]
      %v279 = vld [vmem:[%s219 + $0x6c] sm:$0x3]
      %v280 = vld [vmem:[%s219 + $0x6e] sm:$0x3]
      %v281 = vld [vmem:[%s219 + $0x70] sm:$0x3]
      %v282 = vld [vmem:[%s219 + $0x72] sm:$0x3]
      %v283 = vld [vmem:[%s219 + $0x74] sm:$0x3]
      %v284 = vld [vmem:[%s219 + $0x76] sm:$0x3]
      %v285 = vld [vmem:[%s219 + $0x78] sm:$0x3]
      %v286 = vld [vmem:[%s219 + $0x7a] sm:$0x3]
      %v287 = vld [vmem:[%s219 + $0x7c] sm:$0x3]
      %v288 = vld [vmem:[%s219 + $0x7e] sm:$0x3]
      %v289 = vld [vmem:[%s219 + $0x80] sm:$0x3]
      %v290 = vld [vmem:[%s219 + $0x82] sm:$0x3]
      %v291 = vld [vmem:[%s219 + $0x84] sm:$0x3]
      %v292 = vld [vmem:[%s219 + $0x86] sm:$0x3]
      %v293 = vld [vmem:[%s219 + $0x88] sm:$0x3]
      %v294 = vld [vmem:[%s219 + $0x8a] sm:$0x3]
      %v295 = vld [vmem:[%s219 + $0x8c] sm:$0x3]
      %v296 = vld [vmem:[%s219 + $0x8e] sm:$0x3]
      %v297 = vld [vmem:[%s219 + $0x90] sm:$0x3]
      %v298 = vld [vmem:[%s219 + $0x92] sm:$0x3]
      %v299 = vld [vmem:[%s219 + $0x94] sm:$0x3]
      %v300 = vld [vmem:[%s219 + $0x96] sm:$0x3]
      %v301 = vld [vmem:[%s219 + $0x98] sm:$0x3]
      %v302 = vld [vmem:[%s219 + $0x9a] sm:$0x3]
      %v303 = vld [vmem:[%s219 + $0x9c] sm:$0x3]
      %v304 = vld [vmem:[%s219 + $0x9e] sm:$0x3]
      %v305 = vld [vmem:[%s219 + $0xa0] sm:$0x3]
      %v306 = vld [vmem:[%s219 + $0xa2] sm:$0x3]
      %v307 = vld [vmem:[%s219 + $0xa4] sm:$0x3]
      %v308 = vld [vmem:[%s219 + $0xa6] sm:$0x3]
      %v309 = vld [vmem:[%s219 + $0xa8] sm:$0x3]
      %v310 = vld [vmem:[%s219 + $0xaa] sm:$0x3]
      %v311 = vld [vmem:[%s219 + $0xac] sm:$0x3]
      %v312 = vld [vmem:[%s219 + $0xae] sm:$0x3]
      %v313 = vld [vmem:[%s219 + $0xb0] sm:$0x3]
      %v314 = vld [vmem:[%s219 + $0xb2] sm:$0x3]
      %v315 = vld [vmem:[%s219 + $0xb4] sm:$0x3]
      %v316 = vld [vmem:[%s219 + $0xb6] sm:$0x3]
      %v317 = vld [vmem:[%s219 + $0xb8] sm:$0x3]
      %v318 = vld [vmem:[%s219 + $0xba] sm:$0x3]
      %v319 = vld [vmem:[%s219 + $0xbc] sm:$0x3]
      %v320 = vld [vmem:[%s219 + $0xbe] sm:$0x3]
      %v321 = vld [vmem:[%s219 + $0xc0] sm:$0x3]
      %v322 = vld [vmem:[%s219 + $0xc2] sm:$0x3]
      %v323 = vld [vmem:[%s219 + $0xc4] sm:$0x3]
      %v324 = vld [vmem:[%s219 + $0xc6] sm:$0x3]
      %v325 = vld [vmem:[%s219 + $0xc8] sm:$0x3]
      %v326 = vld [vmem:[%s219 + $0xca] sm:$0x3]
      %v327 = vld [vmem:[%s219 + $0xcc] sm:$0x3]
      %v328 = vld [vmem:[%s219 + $0xce] sm:$0x3]
      %v329 = vld [vmem:[%s219 + $0xd0] sm:$0x3]
      %v330 = vld [vmem:[%s219 + $0xd2] sm:$0x3]
      %v331 = vld [vmem:[%s219 + $0xd4] sm:$0x3]
      %v332 = vld [vmem:[%s219 + $0xd6] sm:$0x3]
      %v333 = vld [vmem:[%s219 + $0xd8] sm:$0x3]
      %v334 = vld [vmem:[%s219 + $0xda] sm:$0x3]
      %v335 = vld [vmem:[%s219 + $0xdc] sm:$0x3]
      %v336 = vld [vmem:[%s219 + $0xde] sm:$0x3]
      %v337 = vld [vmem:[%s219 + $0xe0] sm:$0x3]
      %v338 = vld [vmem:[%s219 + $0xe2] sm:$0x3]
      %v339 = vld [vmem:[%s219 + $0xe4] sm:$0x3]
      %v340 = vld [vmem:[%s219 + $0xe6] sm:$0x3]
      %v341 = vld [vmem:[%s219 + $0xe8] sm:$0x3]
      %v342 = vld [vmem:[%s219 + $0xea] sm:$0x3]
      %v343 = vld [vmem:[%s219 + $0xec] sm:$0x3]
      %v344 = vld [vmem:[%s219 + $0xee] sm:$0x3]
      %v345 = vld [vmem:[%s219 + $0xf0] sm:$0x3]
      %v346 = vld [vmem:[%s219 + $0xf2] sm:$0x3]
      %v347 = vld [vmem:[%s219 + $0xf4] sm:$0x3]
      %v348 = vld [vmem:[%s219 + $0xf6] sm:$0x3]
      %v349 = vld [vmem:[%s219 + $0xf8] sm:$0x3]
      %v350 = vld [vmem:[%s219 + $0xfa] sm:$0x3]
      %v351 = vld [vmem:[%s219 + $0xfc] sm:$0x3]
      %v352 = vld [vmem:[%s219 + $0xfe] sm:$0x3]
      %vm353 = vcmask 25600
      %v354 = vsel %vm353, %v225, -inf
      %v355 = vsel %vm353, %v233, -inf
      %v356 = vmax.f32 %v354, %v355
      %v357 = vsel %vm353, %v226, -inf
      %v358 = vsel %vm353, %v234, -inf
      %v359 = vmax.f32 %v357, %v358
      %v360 = vsel %vm353, %v227, -inf
      %v361 = vsel %vm353, %v235, -inf
      %v362 = vmax.f32 %v360, %v361
      %v363 = vsel %vm353, %v228, -inf
      %v364 = vsel %vm353, %v236, -inf
      %v365 = vmax.f32 %v363, %v364
      %v366 = vsel %vm353, %v229, -inf
      %v367 = vsel %vm353, %v237, -inf
      %v368 = vmax.f32 %v366, %v367
      %v369 = vsel %vm353, %v230, -inf
      %v370 = vsel %vm353, %v238, -inf
      %v371 = vmax.f32 %v369, %v370
      %v372 = vsel %vm353, %v231, -inf
      %v373 = vsel %vm353, %v239, -inf
      %v374 = vmax.f32 %v372, %v373
      %v375 = vsel %vm353, %v232, -inf
      %v376 = vsel %vm353, %v240, -inf
      %v377 = vmax.f32 %v375, %v376
      %v378 = vsel %vm353, %v241, -inf
      %v379 = vsel %vm353, %v249, -inf
      %v380 = vmax.f32 %v378, %v379
      %v381 = vsel %vm353, %v242, -inf
      %v382 = vsel %vm353, %v250, -inf
      %v383 = vmax.f32 %v381, %v382
      %v384 = vsel %vm353, %v243, -inf
      %v385 = vsel %vm353, %v251, -inf
      %v386 = vmax.f32 %v384, %v385
      %v387 = vsel %vm353, %v244, -inf
      %v388 = vsel %vm353, %v252, -inf
      %v389 = vmax.f32 %v387, %v388
      %v390 = vsel %vm353, %v245, -inf
      %v391 = vsel %vm353, %v253, -inf
      %v392 = vmax.f32 %v390, %v391
      %v393 = vsel %vm353, %v246, -inf
      %v394 = vsel %vm353, %v254, -inf
      %v395 = vmax.f32 %v393, %v394
      %v396 = vsel %vm353, %v247, -inf
      %v397 = vsel %vm353, %v255, -inf
      %v398 = vmax.f32 %v396, %v397
      %v399 = vsel %vm353, %v248, -inf
      %v400 = vsel %vm353, %v256, -inf
      %v401 = vmax.f32 %v399, %v400
      %v402 = vsel %vm353, %v257, -inf
      %v403 = vsel %vm353, %v265, -inf
      %v404 = vmax.f32 %v402, %v403
      %v405 = vsel %vm353, %v258, -inf
      %v406 = vsel %vm353, %v266, -inf
      %v407 = vmax.f32 %v405, %v406
      %v408 = vsel %vm353, %v259, -inf
      %v409 = vsel %vm353, %v267, -inf
      %v410 = vmax.f32 %v408, %v409
      %v411 = vsel %vm353, %v260, -inf
      %v412 = vsel %vm353, %v268, -inf
      %v413 = vmax.f32 %v411, %v412
      %v414 = vsel %vm353, %v261, -inf
      %v415 = vsel %vm353, %v269, -inf
      %v416 = vmax.f32 %v414, %v415
      %v417 = vsel %vm353, %v262, -inf
      %v418 = vsel %vm353, %v270, -inf
      %v419 = vmax.f32 %v417, %v418
      %v420 = vsel %vm353, %v263, -inf
      %v421 = vsel %vm353, %v271, -inf
      %v422 = vmax.f32 %v420, %v421
      %v423 = vsel %vm353, %v264, -inf
      %v424 = vsel %vm353, %v272, -inf
      %v425 = vmax.f32 %v423, %v424
      %v426 = vsel %vm353, %v273, -inf
      %v427 = vsel %vm353, %v281, -inf
      %v428 = vmax.f32 %v426, %v427
      %v429 = vsel %vm353, %v274, -inf
      %v430 = vsel %vm353, %v282, -inf
      %v431 = vmax.f32 %v429, %v430
      %v432 = vsel %vm353, %v275, -inf
      %v433 = vsel %vm353, %v283, -inf
      %v434 = vmax.f32 %v432, %v433
      %v435 = vsel %vm353, %v276, -inf
      %v436 = vsel %vm353, %v284, -inf
      %v437 = vmax.f32 %v435, %v436
      %v438 = vsel %vm353, %v277, -inf
      %v439 = vsel %vm353, %v285, -inf
      %v440 = vmax.f32 %v438, %v439
      %v441 = vsel %vm353, %v278, -inf
      %v442 = vsel %vm353, %v286, -inf
      %v443 = vmax.f32 %v441, %v442
      %v444 = vsel %vm353, %v279, -inf
      %v445 = vsel %vm353, %v287, -inf
      %v446 = vmax.f32 %v444, %v445
      %v447 = vsel %vm353, %v280, -inf
      %v448 = vsel %vm353, %v288, -inf
      %v449 = vmax.f32 %v447, %v448
      %v450 = vsel %vm353, %v289, -inf
      %v451 = vsel %vm353, %v297, -inf
      %v452 = vmax.f32 %v450, %v451
      %v453 = vsel %vm353, %v290, -inf
      %v454 = vsel %vm353, %v298, -inf
      %v455 = vmax.f32 %v453, %v454
      %v456 = vsel %vm353, %v291, -inf
      %v457 = vsel %vm353, %v299, -inf
      %v458 = vmax.f32 %v456, %v457
      %v459 = vsel %vm353, %v292, -inf
      %v460 = vsel %vm353, %v300, -inf
      %v461 = vmax.f32 %v459, %v460
      %v462 = vsel %vm353, %v293, -inf
      %v463 = vsel %vm353, %v301, -inf
      %v464 = vmax.f32 %v462, %v463
      %v465 = vsel %vm353, %v294, -inf
      %v466 = vsel %vm353, %v302, -inf
      %v467 = vmax.f32 %v465, %v466
      %v468 = vsel %vm353, %v295, -inf
      %v469 = vsel %vm353, %v303, -inf
      %v470 = vmax.f32 %v468, %v469
      %v471 = vsel %vm353, %v296, -inf
      %v472 = vsel %vm353, %v304, -inf
      %v473 = vmax.f32 %v471, %v472
      %v474 = vsel %vm353, %v305, -inf
      %v475 = vsel %vm353, %v313, -inf
      %v476 = vmax.f32 %v474, %v475
      %v477 = vsel %vm353, %v306, -inf
      %v478 = vsel %vm353, %v314, -inf
      %v479 = vmax.f32 %v477, %v478
      %v480 = vsel %vm353, %v307, -inf
      %v481 = vsel %vm353, %v315, -inf
      %v482 = vmax.f32 %v480, %v481
      %v483 = vsel %vm353, %v308, -inf
      %v484 = vsel %vm353, %v316, -inf
      %v485 = vmax.f32 %v483, %v484
      %v486 = vsel %vm353, %v309, -inf
      %v487 = vsel %vm353, %v317, -inf
      %v488 = vmax.f32 %v486, %v487
      %v489 = vsel %vm353, %v310, -inf
      %v490 = vsel %vm353, %v318, -inf
      %v491 = vmax.f32 %v489, %v490
      %v492 = vsel %vm353, %v311, -inf
      %v493 = vsel %vm353, %v319, -inf
      %v494 = vmax.f32 %v492, %v493
      %v495 = vsel %vm353, %v312, -inf
      %v496 = vsel %vm353, %v320, -inf
      %v497 = vmax.f32 %v495, %v496
      %v498 = vsel %vm353, %v321, -inf
      %v499 = vsel %vm353, %v329, -inf
      %v500 = vmax.f32 %v498, %v499
      %v501 = vsel %vm353, %v322, -inf
      %v502 = vsel %vm353, %v330, -inf
      %v503 = vmax.f32 %v501, %v502
      %v504 = vsel %vm353, %v323, -inf
      %v505 = vsel %vm353, %v331, -inf
      %v506 = vmax.f32 %v504, %v505
      %v507 = vsel %vm353, %v324, -inf
      %v508 = vsel %vm353, %v332, -inf
      %v509 = vmax.f32 %v507, %v508
      %v510 = vsel %vm353, %v325, -inf
      %v511 = vsel %vm353, %v333, -inf
      %v512 = vmax.f32 %v510, %v511
      %v513 = vsel %vm353, %v326, -inf
      %v514 = vsel %vm353, %v334, -inf
      %v515 = vmax.f32 %v513, %v514
      %v516 = vsel %vm353, %v327, -inf
      %v517 = vsel %vm353, %v335, -inf
      %v518 = vmax.f32 %v516, %v517
      %v519 = vsel %vm353, %v328, -inf
      %v520 = vsel %vm353, %v336, -inf
      %v521 = vmax.f32 %v519, %v520
      %v522 = vsel %vm353, %v337, -inf
      %v523 = vsel %vm353, %v345, -inf
      %v524 = vmax.f32 %v522, %v523
      %v525 = vsel %vm353, %v338, -inf
      %v526 = vsel %vm353, %v346, -inf
      %v527 = vmax.f32 %v525, %v526
      %v528 = vsel %vm353, %v339, -inf
      %v529 = vsel %vm353, %v347, -inf
      %v530 = vmax.f32 %v528, %v529
      %v531 = vsel %vm353, %v340, -inf
      %v532 = vsel %vm353, %v348, -inf
      %v533 = vmax.f32 %v531, %v532
      %v534 = vsel %vm353, %v341, -inf
      %v535 = vsel %vm353, %v349, -inf
      %v536 = vmax.f32 %v534, %v535
      %v537 = vsel %vm353, %v342, -inf
      %v538 = vsel %vm353, %v350, -inf
      %v539 = vmax.f32 %v537, %v538
      %v540 = vsel %vm353, %v343, -inf
      %v541 = vsel %vm353, %v351, -inf
      %v542 = vmax.f32 %v540, %v541
      %v543 = vsel %vm353, %v344, -inf
      %v544 = vsel %vm353, %v352, -inf
      %v545 = vmax.f32 %v543, %v544
      %v546 = vsel %vm353, %v356, -inf
      %v547 = vrot.slane %v546, 4
      %v548 = vmax.f32 %v546, %v547
      %v549 = vrot.slane %v548, 2
      %v550 = vmax.f32 %v548, %v549
      %v551 = vrot.slane %v550, 1
      %v552 = vmax.f32 %v550, %v551
      %v553 = vsel %vm353, %v359, -inf
      %v554 = vrot.slane %v553, 4
      %v555 = vmax.f32 %v553, %v554
      %v556 = vrot.slane %v555, 2
      %v557 = vmax.f32 %v555, %v556
      %v558 = vrot.slane %v557, 1
      %v559 = vmax.f32 %v557, %v558
      %v560 = vsel %vm353, %v362, -inf
      %v561 = vrot.slane %v560, 4
      %v562 = vmax.f32 %v560, %v561
      %v563 = vrot.slane %v562, 2
      %v564 = vmax.f32 %v562, %v563
      %v565 = vrot.slane %v564, 1
      %v566 = vmax.f32 %v564, %v565
      %v567 = vsel %vm353, %v365, -inf
      %v568 = vrot.slane %v567, 4
      %v569 = vmax.f32 %v567, %v568
      %v570 = vrot.slane %v569, 2
      %v571 = vmax.f32 %v569, %v570
      %v572 = vrot.slane %v571, 1
      %v573 = vmax.f32 %v571, %v572
      %v574 = vsel %vm353, %v368, -inf
      %v575 = vrot.slane %v574, 4
      %v576 = vmax.f32 %v574, %v575
      %v577 = vrot.slane %v576, 2
      %v578 = vmax.f32 %v576, %v577
      %v579 = vrot.slane %v578, 1
      %v580 = vmax.f32 %v578, %v579
      %v581 = vsel %vm353, %v371, -inf
      %v582 = vrot.slane %v581, 4
      %v583 = vmax.f32 %v581, %v582
      %v584 = vrot.slane %v583, 2
      %v585 = vmax.f32 %v583, %v584
      %v586 = vrot.slane %v585, 1
      %v587 = vmax.f32 %v585, %v586
      %v588 = vsel %vm353, %v374, -inf
      %v589 = vrot.slane %v588, 4
      %v590 = vmax.f32 %v588, %v589
      %v591 = vrot.slane %v590, 2
      %v592 = vmax.f32 %v590, %v591
      %v593 = vrot.slane %v592, 1
      %v594 = vmax.f32 %v592, %v593
      %v595 = vsel %vm353, %v377, -inf
      %v596 = vrot.slane %v595, 4
      %v597 = vmax.f32 %v595, %v596
      %v598 = vrot.slane %v597, 2
      %v599 = vmax.f32 %v597, %v598
      %v600 = vrot.slane %v599, 1
      %v601 = vmax.f32 %v599, %v600
      %v602 = vsel %vm353, %v380, -inf
      %v603 = vrot.slane %v602, 4
      %v604 = vmax.f32 %v602, %v603
      %v605 = vrot.slane %v604, 2
      %v606 = vmax.f32 %v604, %v605
      %v607 = vrot.slane %v606, 1
      %v608 = vmax.f32 %v606, %v607
      %v609 = vsel %vm353, %v383, -inf
      %v610 = vrot.slane %v609, 4
      %v611 = vmax.f32 %v609, %v610
      %v612 = vrot.slane %v611, 2
      %v613 = vmax.f32 %v611, %v612
      %v614 = vrot.slane %v613, 1
      %v615 = vmax.f32 %v613, %v614
      %v616 = vsel %vm353, %v386, -inf
      %v617 = vrot.slane %v616, 4
      %v618 = vmax.f32 %v616, %v617
      %v619 = vrot.slane %v618, 2
      %v620 = vmax.f32 %v618, %v619
      %v621 = vrot.slane %v620, 1
      %v622 = vmax.f32 %v620, %v621
      %v623 = vsel %vm353, %v389, -inf
      %v624 = vrot.slane %v623, 4
      %v625 = vmax.f32 %v623, %v624
      %v626 = vrot.slane %v625, 2
      %v627 = vmax.f32 %v625, %v626
      %v628 = vrot.slane %v627, 1
      %v629 = vmax.f32 %v627, %v628
      %v630 = vsel %vm353, %v392, -inf
      %v631 = vrot.slane %v630, 4
      %v632 = vmax.f32 %v630, %v631
      %v633 = vrot.slane %v632, 2
      %v634 = vmax.f32 %v632, %v633
      %v635 = vrot.slane %v634, 1
      %v636 = vmax.f32 %v634, %v635
      %v637 = vsel %vm353, %v395, -inf
      %v638 = vrot.slane %v637, 4
      %v639 = vmax.f32 %v637, %v638
      %v640 = vrot.slane %v639, 2
      %v641 = vmax.f32 %v639, %v640
      %v642 = vrot.slane %v641, 1
      %v643 = vmax.f32 %v641, %v642
      %v644 = vsel %vm353, %v398, -inf
      %v645 = vrot.slane %v644, 4
      %v646 = vmax.f32 %v644, %v645
      %v647 = vrot.slane %v646, 2
      %v648 = vmax.f32 %v646, %v647
      %v649 = vrot.slane %v648, 1
      %v650 = vmax.f32 %v648, %v649
      %v651 = vsel %vm353, %v401, -inf
      %v652 = vrot.slane %v651, 4
      %v653 = vmax.f32 %v651, %v652
      %v654 = vrot.slane %v653, 2
      %v655 = vmax.f32 %v653, %v654
      %v656 = vrot.slane %v655, 1
      %v657 = vmax.f32 %v655, %v656
      %v658 = vsel %vm353, %v404, -inf
      %v659 = vrot.slane %v658, 4
      %v660 = vmax.f32 %v658, %v659
      %v661 = vrot.slane %v660, 2
      %v662 = vmax.f32 %v660, %v661
      %v663 = vrot.slane %v662, 1
      %v664 = vmax.f32 %v662, %v663
      %v665 = vsel %vm353, %v407, -inf
      %v666 = vrot.slane %v665, 4
      %v667 = vmax.f32 %v665, %v666
      %v668 = vrot.slane %v667, 2
      %v669 = vmax.f32 %v667, %v668
      %v670 = vrot.slane %v669, 1
      %v671 = vmax.f32 %v669, %v670
      %v672 = vsel %vm353, %v410, -inf
      %v673 = vrot.slane %v672, 4
      %v674 = vmax.f32 %v672, %v673
      %v675 = vrot.slane %v674, 2
      %v676 = vmax.f32 %v674, %v675
      %v677 = vrot.slane %v676, 1
      %v678 = vmax.f32 %v676, %v677
      %v679 = vsel %vm353, %v413, -inf
      %v680 = vrot.slane %v679, 4
      %v681 = vmax.f32 %v679, %v680
      %v682 = vrot.slane %v681, 2
      %v683 = vmax.f32 %v681, %v682
      %v684 = vrot.slane %v683, 1
      %v685 = vmax.f32 %v683, %v684
      %v686 = vsel %vm353, %v416, -inf
      %v687 = vrot.slane %v686, 4
      %v688 = vmax.f32 %v686, %v687
      %v689 = vrot.slane %v688, 2
      %v690 = vmax.f32 %v688, %v689
      %v691 = vrot.slane %v690, 1
      %v692 = vmax.f32 %v690, %v691
      %v693 = vsel %vm353, %v419, -inf
      %v694 = vrot.slane %v693, 4
      %v695 = vmax.f32 %v693, %v694
      %v696 = vrot.slane %v695, 2
      %v697 = vmax.f32 %v695, %v696
      %v698 = vrot.slane %v697, 1
      %v699 = vmax.f32 %v697, %v698
      %v700 = vsel %vm353, %v422, -inf
      %v701 = vrot.slane %v700, 4
      %v702 = vmax.f32 %v700, %v701
      %v703 = vrot.slane %v702, 2
      %v704 = vmax.f32 %v702, %v703
      %v705 = vrot.slane %v704, 1
      %v706 = vmax.f32 %v704, %v705
      %v707 = vsel %vm353, %v425, -inf
      %v708 = vrot.slane %v707, 4
      %v709 = vmax.f32 %v707, %v708
      %v710 = vrot.slane %v709, 2
      %v711 = vmax.f32 %v709, %v710
      %v712 = vrot.slane %v711, 1
      %v713 = vmax.f32 %v711, %v712
      %v714 = vsel %vm353, %v428, -inf
      %v715 = vrot.slane %v714, 4
      %v716 = vmax.f32 %v714, %v715
      %v717 = vrot.slane %v716, 2
      %v718 = vmax.f32 %v716, %v717
      %v719 = vrot.slane %v718, 1
      %v720 = vmax.f32 %v718, %v719
      %v721 = vsel %vm353, %v431, -inf
      %v722 = vrot.slane %v721, 4
      %v723 = vmax.f32 %v721, %v722
      %v724 = vrot.slane %v723, 2
      %v725 = vmax.f32 %v723, %v724
      %v726 = vrot.slane %v725, 1
      %v727 = vmax.f32 %v725, %v726
      %v728 = vsel %vm353, %v434, -inf
      %v729 = vrot.slane %v728, 4
      %v730 = vmax.f32 %v728, %v729
      %v731 = vrot.slane %v730, 2
      %v732 = vmax.f32 %v730, %v731
      %v733 = vrot.slane %v732, 1
      %v734 = vmax.f32 %v732, %v733
      %v735 = vsel %vm353, %v437, -inf
      %v736 = vrot.slane %v735, 4
      %v737 = vmax.f32 %v735, %v736
      %v738 = vrot.slane %v737, 2
      %v739 = vmax.f32 %v737, %v738
      %v740 = vrot.slane %v739, 1
      %v741 = vmax.f32 %v739, %v740
      %v742 = vsel %vm353, %v440, -inf
      %v743 = vrot.slane %v742, 4
      %v744 = vmax.f32 %v742, %v743
      %v745 = vrot.slane %v744, 2
      %v746 = vmax.f32 %v744, %v745
      %v747 = vrot.slane %v746, 1
      %v748 = vmax.f32 %v746, %v747
      %v749 = vsel %vm353, %v443, -inf
      %v750 = vrot.slane %v749, 4
      %v751 = vmax.f32 %v749, %v750
      %v752 = vrot.slane %v751, 2
      %v753 = vmax.f32 %v751, %v752
      %v754 = vrot.slane %v753, 1
      %v755 = vmax.f32 %v753, %v754
      %v756 = vsel %vm353, %v446, -inf
      %v757 = vrot.slane %v756, 4
      %v758 = vmax.f32 %v756, %v757
      %v759 = vrot.slane %v758, 2
      %v760 = vmax.f32 %v758, %v759
      %v761 = vrot.slane %v760, 1
      %v762 = vmax.f32 %v760, %v761
      %v763 = vsel %vm353, %v449, -inf
      %v764 = vrot.slane %v763, 4
      %v765 = vmax.f32 %v763, %v764
      %v766 = vrot.slane %v765, 2
      %v767 = vmax.f32 %v765, %v766
      %v768 = vrot.slane %v767, 1
      %v769 = vmax.f32 %v767, %v768
      %v770 = vsel %vm353, %v452, -inf
      %v771 = vrot.slane %v770, 4
      %v772 = vmax.f32 %v770, %v771
      %v773 = vrot.slane %v772, 2
      %v774 = vmax.f32 %v772, %v773
      %v775 = vrot.slane %v774, 1
      %v776 = vmax.f32 %v774, %v775
      %v777 = vsel %vm353, %v455, -inf
      %v778 = vrot.slane %v777, 4
      %v779 = vmax.f32 %v777, %v778
      %v780 = vrot.slane %v779, 2
      %v781 = vmax.f32 %v779, %v780
      %v782 = vrot.slane %v781, 1
      %v783 = vmax.f32 %v781, %v782
      %v784 = vsel %vm353, %v458, -inf
      %v785 = vrot.slane %v784, 4
      %v786 = vmax.f32 %v784, %v785
      %v787 = vrot.slane %v786, 2
      %v788 = vmax.f32 %v786, %v787
      %v789 = vrot.slane %v788, 1
      %v790 = vmax.f32 %v788, %v789
      %v791 = vsel %vm353, %v461, -inf
      %v792 = vrot.slane %v791, 4
      %v793 = vmax.f32 %v791, %v792
      %v794 = vrot.slane %v793, 2
      %v795 = vmax.f32 %v793, %v794
      %v796 = vrot.slane %v795, 1
      %v797 = vmax.f32 %v795, %v796
      %v798 = vsel %vm353, %v464, -inf
      %v799 = vrot.slane %v798, 4
      %v800 = vmax.f32 %v798, %v799
      %v801 = vrot.slane %v800, 2
      %v802 = vmax.f32 %v800, %v801
      %v803 = vrot.slane %v802, 1
      %v804 = vmax.f32 %v802, %v803
      %v805 = vsel %vm353, %v467, -inf
      %v806 = vrot.slane %v805, 4
      %v807 = vmax.f32 %v805, %v806
      %v808 = vrot.slane %v807, 2
      %v809 = vmax.f32 %v807, %v808
      %v810 = vrot.slane %v809, 1
      %v811 = vmax.f32 %v809, %v810
      %v812 = vsel %vm353, %v470, -inf
      %v813 = vrot.slane %v812, 4
      %v814 = vmax.f32 %v812, %v813
      %v815 = vrot.slane %v814, 2
      %v816 = vmax.f32 %v814, %v815
      %v817 = vrot.slane %v816, 1
      %v818 = vmax.f32 %v816, %v817
      %v819 = vsel %vm353, %v473, -inf
      %v820 = vrot.slane %v819, 4
      %v821 = vmax.f32 %v819, %v820
      %v822 = vrot.slane %v821, 2
      %v823 = vmax.f32 %v821, %v822
      %v824 = vrot.slane %v823, 1
      %v825 = vmax.f32 %v823, %v824
      %v826 = vsel %vm353, %v476, -inf
      %v827 = vrot.slane %v826, 4
      %v828 = vmax.f32 %v826, %v827
      %v829 = vrot.slane %v828, 2
      %v830 = vmax.f32 %v828, %v829
      %v831 = vrot.slane %v830, 1
      %v832 = vmax.f32 %v830, %v831
      %v833 = vsel %vm353, %v479, -inf
      %v834 = vrot.slane %v833, 4
      %v835 = vmax.f32 %v833, %v834
      %v836 = vrot.slane %v835, 2
      %v837 = vmax.f32 %v835, %v836
      %v838 = vrot.slane %v837, 1
      %v839 = vmax.f32 %v837, %v838
      %v840 = vsel %vm353, %v482, -inf
      %v841 = vrot.slane %v840, 4
      %v842 = vmax.f32 %v840, %v841
      %v843 = vrot.slane %v842, 2
      %v844 = vmax.f32 %v842, %v843
      %v845 = vrot.slane %v844, 1
      %v846 = vmax.f32 %v844, %v845
      %v847 = vsel %vm353, %v485, -inf
      %v848 = vrot.slane %v847, 4
      %v849 = vmax.f32 %v847, %v848
      %v850 = vrot.slane %v849, 2
      %v851 = vmax.f32 %v849, %v850
      %v852 = vrot.slane %v851, 1
      %v853 = vmax.f32 %v851, %v852
      %v854 = vsel %vm353, %v488, -inf
      %v855 = vrot.slane %v854, 4
      %v856 = vmax.f32 %v854, %v855
      %v857 = vrot.slane %v856, 2
      %v858 = vmax.f32 %v856, %v857
      %v859 = vrot.slane %v858, 1
      %v860 = vmax.f32 %v858, %v859
      %v861 = vsel %vm353, %v491, -inf
      %v862 = vrot.slane %v861, 4
      %v863 = vmax.f32 %v861, %v862
      %v864 = vrot.slane %v863, 2
      %v865 = vmax.f32 %v863, %v864
      %v866 = vrot.slane %v865, 1
      %v867 = vmax.f32 %v865, %v866
      %v868 = vsel %vm353, %v494, -inf
      %v869 = vrot.slane %v868, 4
      %v870 = vmax.f32 %v868, %v869
      %v871 = vrot.slane %v870, 2
      %v872 = vmax.f32 %v870, %v871
      %v873 = vrot.slane %v872, 1
      %v874 = vmax.f32 %v872, %v873
      %v875 = vsel %vm353, %v497, -inf
      %v876 = vrot.slane %v875, 4
      %v877 = vmax.f32 %v875, %v876
      %v878 = vrot.slane %v877, 2
      %v879 = vmax.f32 %v877, %v878
      %v880 = vrot.slane %v879, 1
      %v881 = vmax.f32 %v879, %v880
      %v882 = vsel %vm353, %v500, -inf
      %v883 = vrot.slane %v882, 4
      %v884 = vmax.f32 %v882, %v883
      %v885 = vrot.slane %v884, 2
      %v886 = vmax.f32 %v884, %v885
      %v887 = vrot.slane %v886, 1
      %v888 = vmax.f32 %v886, %v887
      %v889 = vsel %vm353, %v503, -inf
      %v890 = vrot.slane %v889, 4
      %v891 = vmax.f32 %v889, %v890
      %v892 = vrot.slane %v891, 2
      %v893 = vmax.f32 %v891, %v892
      %v894 = vrot.slane %v893, 1
      %v895 = vmax.f32 %v893, %v894
      %v896 = vsel %vm353, %v506, -inf
      %v897 = vrot.slane %v896, 4
      %v898 = vmax.f32 %v896, %v897
      %v899 = vrot.slane %v898, 2
      %v900 = vmax.f32 %v898, %v899
      %v901 = vrot.slane %v900, 1
      %v902 = vmax.f32 %v900, %v901
      %v903 = vsel %vm353, %v509, -inf
      %v904 = vrot.slane %v903, 4
      %v905 = vmax.f32 %v903, %v904
      %v906 = vrot.slane %v905, 2
      %v907 = vmax.f32 %v905, %v906
      %v908 = vrot.slane %v907, 1
      %v909 = vmax.f32 %v907, %v908
      %v910 = vsel %vm353, %v512, -inf
      %v911 = vrot.slane %v910, 4
      %v912 = vmax.f32 %v910, %v911
      %v913 = vrot.slane %v912, 2
      %v914 = vmax.f32 %v912, %v913
      %v915 = vrot.slane %v914, 1
      %v916 = vmax.f32 %v914, %v915
      %v917 = vsel %vm353, %v515, -inf
      %v918 = vrot.slane %v917, 4
      %v919 = vmax.f32 %v917, %v918
      %v920 = vrot.slane %v919, 2
      %v921 = vmax.f32 %v919, %v920
      %v922 = vrot.slane %v921, 1
      %v923 = vmax.f32 %v921, %v922
      %v924 = vsel %vm353, %v518, -inf
      %v925 = vrot.slane %v924, 4
      %v926 = vmax.f32 %v924, %v925
      %v927 = vrot.slane %v926, 2
      %v928 = vmax.f32 %v926, %v927
      %v929 = vrot.slane %v928, 1
      %v930 = vmax.f32 %v928, %v929
      %v931 = vsel %vm353, %v521, -inf
      %v932 = vrot.slane %v931, 4
      %v933 = vmax.f32 %v931, %v932
      %v934 = vrot.slane %v933, 2
      %v935 = vmax.f32 %v933, %v934
      %v936 = vrot.slane %v935, 1
      %v937 = vmax.f32 %v935, %v936
      %v938 = vsel %vm353, %v524, -inf
      %v939 = vrot.slane %v938, 4
      %v940 = vmax.f32 %v938, %v939
      %v941 = vrot.slane %v940, 2
      %v942 = vmax.f32 %v940, %v941
      %v943 = vrot.slane %v942, 1
      %v944 = vmax.f32 %v942, %v943
      %v945 = vsel %vm353, %v527, -inf
      %v946 = vrot.slane %v945, 4
      %v947 = vmax.f32 %v945, %v946
      %v948 = vrot.slane %v947, 2
      %v949 = vmax.f32 %v947, %v948
      %v950 = vrot.slane %v949, 1
      %v951 = vmax.f32 %v949, %v950
      %v952 = vsel %vm353, %v530, -inf
      %v953 = vrot.slane %v952, 4
      %v954 = vmax.f32 %v952, %v953
      %v955 = vrot.slane %v954, 2
      %v956 = vmax.f32 %v954, %v955
      %v957 = vrot.slane %v956, 1
      %v958 = vmax.f32 %v956, %v957
      %v959 = vsel %vm353, %v533, -inf
      %v960 = vrot.slane %v959, 4
      %v961 = vmax.f32 %v959, %v960
      %v962 = vrot.slane %v961, 2
      %v963 = vmax.f32 %v961, %v962
      %v964 = vrot.slane %v963, 1
      %v965 = vmax.f32 %v963, %v964
      %v966 = vsel %vm353, %v536, -inf
      %v967 = vrot.slane %v966, 4
      %v968 = vmax.f32 %v966, %v967
      %v969 = vrot.slane %v968, 2
      %v970 = vmax.f32 %v968, %v969
      %v971 = vrot.slane %v970, 1
      %v972 = vmax.f32 %v970, %v971
      %v973 = vsel %vm353, %v539, -inf
      %v974 = vrot.slane %v973, 4
      %v975 = vmax.f32 %v973, %v974
      %v976 = vrot.slane %v975, 2
      %v977 = vmax.f32 %v975, %v976
      %v978 = vrot.slane %v977, 1
      %v979 = vmax.f32 %v977, %v978
      %v980 = vsel %vm353, %v542, -inf
      %v981 = vrot.slane %v980, 4
      %v982 = vmax.f32 %v980, %v981
      %v983 = vrot.slane %v982, 2
      %v984 = vmax.f32 %v982, %v983
      %v985 = vrot.slane %v984, 1
      %v986 = vmax.f32 %v984, %v985
      %v987 = vsel %vm353, %v545, -inf
      %v988 = vrot.slane %v987, 4
      %v989 = vmax.f32 %v987, %v988
      %v990 = vrot.slane %v989, 2
      %v991 = vmax.f32 %v989, %v990
      %v992 = vrot.slane %v991, 1
      %v993 = vmax.f32 %v991, %v992
      %vm994 = vcmask 31744
      %995 = vst.msk [vmem:[#allocation2] sm:$0xff] %vm994, 0.0
      %996 = vst.msk [vmem:[#allocation2 + $0x8] sm:$0x3] %vm353, 0.0
      %997 = vst.msk [vmem:[#allocation2 + $0x10] sm:$0xff] %vm994, 0.0
      %998 = vst.msk [vmem:[#allocation2 + $0x18] sm:$0x3] %vm353, 0.0
      %999 = vst.msk [vmem:[#allocation2 + $0x20] sm:$0xff] %vm994, 0.0
      %1000 = vst.msk [vmem:[#allocation2 + $0x28] sm:$0x3] %vm353, 0.0
      %1001 = vst.msk [vmem:[#allocation2 + $0x30] sm:$0xff] %vm994, 0.0
      %1002 = vst.msk [vmem:[#allocation2 + $0x38] sm:$0x3] %vm353, 0.0
      %1003 = vst.msk [vmem:[#allocation2 + $0x40] sm:$0xff] %vm994, 0.0
      %1004 = vst.msk [vmem:[#allocation2 + $0x48] sm:$0x3] %vm353, 0.0
      %1005 = vst.msk [vmem:[#allocation2 + $0x50] sm:$0xff] %vm994, 0.0
      %1006 = vst.msk [vmem:[#allocation2 + $0x58] sm:$0x3] %vm353, 0.0
      %1007 = vst.msk [vmem:[#allocation2 + $0x60] sm:$0xff] %vm994, 0.0
      %1008 = vst.msk [vmem:[#allocation2 + $0x68] sm:$0x3] %vm353, 0.0
      %1009 = vst.msk [vmem:[#allocation2 + $0x70] sm:$0xff] %vm994, 0.0
      %1010 = vst.msk [vmem:[#allocation2 + $0x78] sm:$0x3] %vm353, 0.0
      %1011 = vst.msk [vmem:[#allocation2 + $0x80] sm:$0xff] %vm994, 0.0
      %1012 = vst.msk [vmem:[#allocation2 + $0x88] sm:$0x3] %vm353, 0.0
      %1013 = vst.msk [vmem:[#allocation2 + $0x90] sm:$0xff] %vm994, 0.0
      %1014 = vst.msk [vmem:[#allocation2 + $0x98] sm:$0x3] %vm353, 0.0
      %vm1079 = vcmask 1041409
      %v1080 = vsel %vm1079, %v559, %v552
      %vm1081 = vcmask 1042434
      %v1082 = vsel %vm1081, %v566, %v1080
      %vm1083 = vcmask 1043459
      %v1084 = vsel %vm1083, %v573, %v1082
      %vm1085 = vcmask 1044484
      %v1086 = vsel %vm1085, %v580, %v1084
      %vm1087 = vcmask 1045509
      %v1088 = vsel %vm1087, %v587, %v1086
      %vm1089 = vcmask 1046534
      %v1090 = vsel %vm1089, %v594, %v1088
      %vm1091 = vcmask 1047559
      %v1092 = vsel %vm1091, %v601, %v1090
      %v1093 = vsel %vm1079, %v615, %v608
      %v1094 = vsel %vm1081, %v622, %v1093
      %v1095 = vsel %vm1083, %v629, %v1094
      %v1096 = vsel %vm1085, %v636, %v1095
      %v1097 = vsel %vm1087, %v643, %v1096
      %v1098 = vsel %vm1089, %v650, %v1097
      %v1099 = vsel %vm1091, %v657, %v1098
      %v1100 = vsel %vm1079, %v671, %v664
      %v1101 = vsel %vm1081, %v678, %v1100
      %v1102 = vsel %vm1083, %v685, %v1101
      %v1103 = vsel %vm1085, %v692, %v1102
      %v1104 = vsel %vm1087, %v699, %v1103
      %v1105 = vsel %vm1089, %v706, %v1104
      %v1106 = vsel %vm1091, %v713, %v1105
      %v1107 = vsel %vm1079, %v727, %v720
      %v1108 = vsel %vm1081, %v734, %v1107
      %v1109 = vsel %vm1083, %v741, %v1108
      %v1110 = vsel %vm1085, %v748, %v1109
      %v1111 = vsel %vm1087, %v755, %v1110
      %v1112 = vsel %vm1089, %v762, %v1111
      %v1113 = vsel %vm1091, %v769, %v1112
      %v1114 = vsel %vm1079, %v783, %v776
      %v1115 = vsel %vm1081, %v790, %v1114
      %v1116 = vsel %vm1083, %v797, %v1115
      %v1117 = vsel %vm1085, %v804, %v1116
      %v1118 = vsel %vm1087, %v811, %v1117
      %v1119 = vsel %vm1089, %v818, %v1118
      %v1120 = vsel %vm1091, %v825, %v1119
      %v1121 = vsel %vm1079, %v839, %v832
      %v1122 = vsel %vm1081, %v846, %v1121
      %v1123 = vsel %vm1083, %v853, %v1122
      %v1124 = vsel %vm1085, %v860, %v1123
      %v1125 = vsel %vm1087, %v867, %v1124
      %v1126 = vsel %vm1089, %v874, %v1125
      %v1127 = vsel %vm1091, %v881, %v1126
      %v1128 = vsel %vm1079, %v895, %v888
      %v1129 = vsel %vm1081, %v902, %v1128
      %v1130 = vsel %vm1083, %v909, %v1129
      %v1131 = vsel %vm1085, %v916, %v1130
      %v1132 = vsel %vm1087, %v923, %v1131
      %v1133 = vsel %vm1089, %v930, %v1132
      %v1134 = vsel %vm1091, %v937, %v1133
      %v1135 = vsel %vm1079, %v951, %v944
      %v1136 = vsel %vm1081, %v958, %v1135
      %v1137 = vsel %vm1083, %v965, %v1136
      %v1138 = vsel %vm1085, %v972, %v1137
      %v1139 = vsel %vm1087, %v979, %v1138
      %v1140 = vsel %vm1089, %v986, %v1139
      %v1141 = vsel %vm1091, %v993, %v1140
      %s1150 = scalar_lea.vmem [#allocation2], 16
      %1151 = vst.msk [vmem:[%s1150 + $0x1] sm:$0xff] %vm994, %v1092
      %1152 = vst.msk [vmem:[%s1150 + $0x11] sm:$0xff] %vm994, %v1099
      %1153 = vst.msk [vmem:[%s1150 + $0x21] sm:$0xff] %vm994, %v1106
      %1154 = vst.msk [vmem:[%s1150 + $0x31] sm:$0xff] %vm994, %v1113
      %1155 = vst.msk [vmem:[%s1150 + $0x41] sm:$0xff] %vm994, %v1120
      %1156 = vst.msk [vmem:[%s1150 + $0x51] sm:$0xff] %vm994, %v1127
      %1157 = vst.msk [vmem:[%s1150 + $0x61] sm:$0xff] %vm994, %v1134
      %1158 = vst.msk [vmem:[%s1150 + $0x71] sm:$0xff] %vm994, %v1141
      %v1159 = vld [vmem:[#allocation2] sm:$0xff]
      %v1160 = vld [vmem:[#allocation2 + $0x8] sm:$0x3]
      %v1161 = vld [vmem:[#allocation2 + $0x10] sm:$0xff]
      %v1162 = vld [vmem:[#allocation2 + $0x18] sm:$0x3]
      %v1163 = vld [vmem:[#allocation2 + $0x20] sm:$0xff]
      %v1164 = vld [vmem:[#allocation2 + $0x28] sm:$0x3]
      %v1165 = vld [vmem:[#allocation2 + $0x30] sm:$0xff]
      %v1166 = vld [vmem:[#allocation2 + $0x38] sm:$0x3]
      %v1167 = vld [vmem:[#allocation2 + $0x40] sm:$0xff]
      %v1168 = vld [vmem:[#allocation2 + $0x48] sm:$0x3]
      %v1169 = vld [vmem:[#allocation2 + $0x50] sm:$0xff]
      %v1170 = vld [vmem:[#allocation2 + $0x58] sm:$0x3]
      %v1171 = vld [vmem:[#allocation2 + $0x60] sm:$0xff]
      %v1172 = vld [vmem:[#allocation2 + $0x68] sm:$0x3]
      %v1173 = vld [vmem:[#allocation2 + $0x70] sm:$0xff]
      %v1174 = vld [vmem:[#allocation2 + $0x78] sm:$0x3]
      %v1175 = vld [vmem:[#allocation2 + $0x80] sm:$0xff]
      %v1176 = vld [vmem:[#allocation2 + $0x88] sm:$0x3]
      %v1177 = vld [vmem:[#allocation2 + $0x90] sm:$0xff]
      %v1178 = vld [vmem:[#allocation2 + $0x98] sm:$0x3]
      %vm1195 = vcmask 1046528
      %v1196 = vrot.slane %v1159, 1
      %v1197 = vrot.slane %v1160, 1
      %v1198 = vsel %vm1195, %v1196, %v1197
      %v1199 = vrot.slane %v1161, 1
      %v1200 = vrot.slane %v1162, 1
      %v1201 = vsel %vm1195, %v1199, %v1200
      %v1202 = vrot.slane %v1163, 1
      %v1203 = vrot.slane %v1164, 1
      %v1204 = vsel %vm1195, %v1202, %v1203
      %v1205 = vrot.slane %v1165, 1
      %v1206 = vrot.slane %v1166, 1
      %v1207 = vsel %vm1195, %v1205, %v1206
      %v1208 = vrot.slane %v1167, 1
      %v1209 = vrot.slane %v1168, 1
      %v1210 = vsel %vm1195, %v1208, %v1209
      %v1211 = vrot.slane %v1169, 1
      %v1212 = vrot.slane %v1170, 1
      %v1213 = vsel %vm1195, %v1211, %v1212
      %v1214 = vrot.slane %v1171, 1
      %v1215 = vrot.slane %v1172, 1
      %v1216 = vsel %vm1195, %v1214, %v1215
      %v1217 = vrot.slane %v1173, 1
      %v1218 = vrot.slane %v1174, 1
      %v1219 = vsel %vm1195, %v1217, %v1218
      %1220 = vrot.lane.b32.xlu0 %v1198, 4
      %v1221 = vpop.permute.xlu0 %1220
      %1222 = vrot.lane.b32.xlu0 %v1201, 4
      %v1223 = vpop.permute.xlu0 %1222
      %1224 = vrot.lane.b32.xlu0 %v1204, 4
      %v1225 = vpop.permute.xlu0 %1224
      %1226 = vrot.lane.b32.xlu0 %v1207, 4
      %v1227 = vpop.permute.xlu0 %1226
      %1228 = vrot.lane.b32.xlu0 %v1210, 4
      %v1229 = vpop.permute.xlu0 %1228
      %1230 = vrot.lane.b32.xlu0 %v1213, 4
      %v1231 = vpop.permute.xlu0 %1230
      %1232 = vrot.lane.b32.xlu0 %v1216, 4
      %v1233 = vpop.permute.xlu0 %1232
      %1234 = vrot.lane.b32.xlu0 %v1219, 4
      %v1235 = vpop.permute.xlu0 %1234
      %vm1244 = vcmask 1045504
      %v1245 = vrot.slane %v1159, 2
      %v1246 = vrot.slane %v1160, 2
      %v1247 = vsel %vm1244, %v1245, %v1246
      %v1248 = vrot.slane %v1161, 2
      %v1249 = vrot.slane %v1162, 2
      %v1250 = vsel %vm1244, %v1248, %v1249
      %v1251 = vrot.slane %v1163, 2
      %v1252 = vrot.slane %v1164, 2
      %v1253 = vsel %vm1244, %v1251, %v1252
      %v1254 = vrot.slane %v1165, 2
      %v1255 = vrot.slane %v1166, 2
      %v1256 = vsel %vm1244, %v1254, %v1255
      %v1257 = vrot.slane %v1167, 2
      %v1258 = vrot.slane %v1168, 2
      %v1259 = vsel %vm1244, %v1257, %v1258
      %v1260 = vrot.slane %v1169, 2
      %v1261 = vrot.slane %v1170, 2
      %v1262 = vsel %vm1244, %v1260, %v1261
      %v1263 = vrot.slane %v1171, 2
      %v1264 = vrot.slane %v1172, 2
      %v1265 = vsel %vm1244, %v1263, %v1264
      %v1266 = vrot.slane %v1173, 2
      %v1267 = vrot.slane %v1174, 2
      %v1268 = vsel %vm1244, %v1266, %v1267
      %1269 = vrot.lane.b32.xlu0 %v1247, 8
      %v1270 = vpop.permute.xlu0 %1269
      %1271 = vrot.lane.b32.xlu0 %v1250, 8
      %v1272 = vpop.permute.xlu0 %1271
      %1273 = vrot.lane.b32.xlu0 %v1253, 8
      %v1274 = vpop.permute.xlu0 %1273
      %1275 = vrot.lane.b32.xlu0 %v1256, 8
      %v1276 = vpop.permute.xlu0 %1275
      %1277 = vrot.lane.b32.xlu0 %v1259, 8
      %v1278 = vpop.permute.xlu0 %1277
      %1279 = vrot.lane.b32.xlu0 %v1262, 8
      %v1280 = vpop.permute.xlu0 %1279
      %1281 = vrot.lane.b32.xlu0 %v1265, 8
      %v1282 = vpop.permute.xlu0 %1281
      %1283 = vrot.lane.b32.xlu0 %v1268, 8
      %v1284 = vpop.permute.xlu0 %1283
      %1294 = vrot.lane.b32.xlu0 %v1161, 12
      %v1295 = vpop.permute.xlu0 %1294
      %1296 = vrot.lane.b32.xlu0 %v1163, 12
      %v1297 = vpop.permute.xlu0 %1296
      %1298 = vrot.lane.b32.xlu0 %v1165, 12
      %v1299 = vpop.permute.xlu0 %1298
      %1300 = vrot.lane.b32.xlu0 %v1167, 12
      %v1301 = vpop.permute.xlu0 %1300
      %1302 = vrot.lane.b32.xlu0 %v1169, 12
      %v1303 = vpop.permute.xlu0 %1302
      %1304 = vrot.lane.b32.xlu0 %v1171, 12
      %v1305 = vpop.permute.xlu0 %1304
      %1306 = vrot.lane.b32.xlu0 %v1173, 12
      %v1307 = vpop.permute.xlu0 %1306
      %1308 = vrot.lane.b32.xlu0 %v1175, 12
      %v1309 = vpop.permute.xlu0 %1308
      %v1319 = vrot.slane %v1175, 1
      %v1320 = vrot.slane %v1176, 1
      %v1321 = vsel %vm1195, %v1319, %v1320
      %1322 = vrot.lane.b32.xlu0 %v1201, 16
      %v1323 = vpop.permute.xlu0 %1322
      %1324 = vrot.lane.b32.xlu0 %v1204, 16
      %v1325 = vpop.permute.xlu0 %1324
      %1326 = vrot.lane.b32.xlu0 %v1207, 16
      %v1327 = vpop.permute.xlu0 %1326
      %1328 = vrot.lane.b32.xlu0 %v1210, 16
      %v1329 = vpop.permute.xlu0 %1328
      %1330 = vrot.lane.b32.xlu0 %v1213, 16
      %v1331 = vpop.permute.xlu0 %1330
      %1332 = vrot.lane.b32.xlu0 %v1216, 16
      %v1333 = vpop.permute.xlu0 %1332
      %1334 = vrot.lane.b32.xlu0 %v1219, 16
      %v1335 = vpop.permute.xlu0 %1334
      %1336 = vrot.lane.b32.xlu0 %v1321, 16
      %v1337 = vpop.permute.xlu0 %1336
      %v1346 = vrot.slane %v1175, 2
      %v1347 = vrot.slane %v1176, 2
      %v1348 = vsel %vm1244, %v1346, %v1347
      %1349 = vrot.lane.b32.xlu0 %v1250, 20
      %v1350 = vpop.permute.xlu0 %1349
      %1351 = vrot.lane.b32.xlu0 %v1253, 20
      %v1352 = vpop.permute.xlu0 %1351
      %1353 = vrot.lane.b32.xlu0 %v1256, 20
      %v1354 = vpop.permute.xlu0 %1353
      %1355 = vrot.lane.b32.xlu0 %v1259, 20
      %v1356 = vpop.permute.xlu0 %1355
      %1357 = vrot.lane.b32.xlu0 %v1262, 20
      %v1358 = vpop.permute.xlu0 %1357
      %1359 = vrot.lane.b32.xlu0 %v1265, 20
      %v1360 = vpop.permute.xlu0 %1359
      %1361 = vrot.lane.b32.xlu0 %v1268, 20
      %v1362 = vpop.permute.xlu0 %1361
      %1363 = vrot.lane.b32.xlu0 %v1348, 20
      %v1364 = vpop.permute.xlu0 %1363
      %1374 = vrot.lane.b32.xlu0 %v1163, 24
      %v1375 = vpop.permute.xlu0 %1374
      %1376 = vrot.lane.b32.xlu0 %v1165, 24
      %v1377 = vpop.permute.xlu0 %1376
      %1378 = vrot.lane.b32.xlu0 %v1167, 24
      %v1379 = vpop.permute.xlu0 %1378
      %1380 = vrot.lane.b32.xlu0 %v1169, 24
      %v1381 = vpop.permute.xlu0 %1380
      %1382 = vrot.lane.b32.xlu0 %v1171, 24
      %v1383 = vpop.permute.xlu0 %1382
      %1384 = vrot.lane.b32.xlu0 %v1173, 24
      %v1385 = vpop.permute.xlu0 %1384
      %1386 = vrot.lane.b32.xlu0 %v1175, 24
      %v1387 = vpop.permute.xlu0 %1386
      %1388 = vrot.lane.b32.xlu0 %v1177, 24
      %v1389 = vpop.permute.xlu0 %1388
      %v1399 = vrot.slane %v1177, 1
      %v1400 = vrot.slane %v1178, 1
      %v1401 = vsel %vm1195, %v1399, %v1400
      %1402 = vrot.lane.b32.xlu0 %v1204, 28
      %v1403 = vpop.permute.xlu0 %1402
      %1404 = vrot.lane.b32.xlu0 %v1207, 28
      %v1405 = vpop.permute.xlu0 %1404
      %1406 = vrot.lane.b32.xlu0 %v1210, 28
      %v1407 = vpop.permute.xlu0 %1406
      %1408 = vrot.lane.b32.xlu0 %v1213, 28
      %v1409 = vpop.permute.xlu0 %1408
      %1410 = vrot.lane.b32.xlu0 %v1216, 28
      %v1411 = vpop.permute.xlu0 %1410
      %1412 = vrot.lane.b32.xlu0 %v1219, 28
      %v1413 = vpop.permute.xlu0 %1412
      %1414 = vrot.lane.b32.xlu0 %v1321, 28
      %v1415 = vpop.permute.xlu0 %1414
      %1416 = vrot.lane.b32.xlu0 %v1401, 28
      %v1417 = vpop.permute.xlu0 %1416
      %v1426 = vrot.slane %v1177, 2
      %v1427 = vrot.slane %v1178, 2
      %v1428 = vsel %vm1244, %v1426, %v1427
      %1429 = vrot.lane.b32.xlu0 %v1253, 32
      %v1430 = vpop.permute.xlu0 %1429
      %1431 = vrot.lane.b32.xlu0 %v1256, 32
      %v1432 = vpop.permute.xlu0 %1431
      %1433 = vrot.lane.b32.xlu0 %v1259, 32
      %v1434 = vpop.permute.xlu0 %1433
      %1435 = vrot.lane.b32.xlu0 %v1262, 32
      %v1436 = vpop.permute.xlu0 %1435
      %1437 = vrot.lane.b32.xlu0 %v1265, 32
      %v1438 = vpop.permute.xlu0 %1437
      %1439 = vrot.lane.b32.xlu0 %v1268, 32
      %v1440 = vpop.permute.xlu0 %1439
      %1441 = vrot.lane.b32.xlu0 %v1348, 32
      %v1442 = vpop.permute.xlu0 %1441
      %1443 = vrot.lane.b32.xlu0 %v1428, 32
      %v1444 = vpop.permute.xlu0 %1443
      %v1453 = vsel %vm994, %v1159, %v1221
      %v1454 = vsel %vm994, %v1161, %v1223
      %v1455 = vsel %vm994, %v1163, %v1225
      %v1456 = vsel %vm994, %v1165, %v1227
      %v1457 = vsel %vm994, %v1167, %v1229
      %v1458 = vsel %vm994, %v1169, %v1231
      %v1459 = vsel %vm994, %v1171, %v1233
      %v1460 = vsel %vm994, %v1173, %v1235
      %vm1461 = vcmask 64512
      %v1462 = vsel %vm1461, %v1453, %v1270
      %v1463 = vsel %vm1461, %v1454, %v1272
      %v1464 = vsel %vm1461, %v1455, %v1274
      %v1465 = vsel %vm1461, %v1456, %v1276
      %v1466 = vsel %vm1461, %v1457, %v1278
      %v1467 = vsel %vm1461, %v1458, %v1280
      %v1468 = vsel %vm1461, %v1459, %v1282
      %v1469 = vsel %vm1461, %v1460, %v1284
      %vm1470 = vcmask 97280
      %v1471 = vsel %vm1470, %v1462, %v1295
      %v1472 = vsel %vm1470, %v1463, %v1297
      %v1473 = vsel %vm1470, %v1464, %v1299
      %v1474 = vsel %vm1470, %v1465, %v1301
      %v1475 = vsel %vm1470, %v1466, %v1303
      %v1476 = vsel %vm1470, %v1467, %v1305
      %v1477 = vsel %vm1470, %v1468, %v1307
      %v1478 = vsel %vm1470, %v1469, %v1309
      %vm1479 = vcmask 130048
      %v1480 = vsel %vm1479, %v1471, %v1323
      %v1481 = vsel %vm1479, %v1472, %v1325
      %v1482 = vsel %vm1479, %v1473, %v1327
      %v1483 = vsel %vm1479, %v1474, %v1329
      %v1484 = vsel %vm1479, %v1475, %v1331
      %v1485 = vsel %vm1479, %v1476, %v1333
      %v1486 = vsel %vm1479, %v1477, %v1335
      %v1487 = vsel %vm1479, %v1478, %v1337
      %vm1488 = vcmask 162816
      %v1489 = vsel %vm1488, %v1480, %v1350
      %v1490 = vsel %vm1488, %v1481, %v1352
      %v1491 = vsel %vm1488, %v1482, %v1354
      %v1492 = vsel %vm1488, %v1483, %v1356
      %v1493 = vsel %vm1488, %v1484, %v1358
      %v1494 = vsel %vm1488, %v1485, %v1360
      %v1495 = vsel %vm1488, %v1486, %v1362
      %v1496 = vsel %vm1488, %v1487, %v1364
      %vm1497 = vcmask 195584
      %v1498 = vsel %vm1497, %v1489, %v1375
      %v1499 = vsel %vm1497, %v1490, %v1377
      %v1500 = vsel %vm1497, %v1491, %v1379
      %v1501 = vsel %vm1497, %v1492, %v1381
      %v1502 = vsel %vm1497, %v1493, %v1383
      %v1503 = vsel %vm1497, %v1494, %v1385
      %v1504 = vsel %vm1497, %v1495, %v1387
      %v1505 = vsel %vm1497, %v1496, %v1389
      %vm1506 = vcmask 228352
      %v1507 = vsel %vm1506, %v1498, %v1403
      %v1508 = vsel %vm1506, %v1499, %v1405
      %v1509 = vsel %vm1506, %v1500, %v1407
      %v1510 = vsel %vm1506, %v1501, %v1409
      %v1511 = vsel %vm1506, %v1502, %v1411
      %v1512 = vsel %vm1506, %v1503, %v1413
      %v1513 = vsel %vm1506, %v1504, %v1415
      %v1514 = vsel %vm1506, %v1505, %v1417
      %vm1515 = vcmask 261120
      %v1516 = vsel %vm1515, %v1507, %v1430
      %v1517 = vsel %vm1515, %v1508, %v1432
      %v1518 = vsel %vm1515, %v1509, %v1434
      %v1519 = vsel %vm1515, %v1510, %v1436
      %v1520 = vsel %vm1515, %v1511, %v1438
      %v1521 = vsel %vm1515, %v1512, %v1440
      %v1522 = vsel %vm1515, %v1513, %v1442
      %v1523 = vsel %vm1515, %v1514, %v1444
      %v1524 = vld [vmem:[%s1] sm:$0xff]
      %v1525 = vld [vmem:[%s1 + $0x8] sm:$0xff]
      %v1526 = vld [vmem:[%s1 + $0x10] sm:$0xff]
      %v1527 = vld [vmem:[%s1 + $0x18] sm:$0xff]
      %v1528 = vld [vmem:[%s1 + $0x20] sm:$0xf]
      %v1529 = vld [vmem:[%s2] sm:$0x1]
      %v1531 = vlaneseq
      %v1532 = vshrl.u32 %v1531, 7
      %v1533 = vsub.s32 0, %v1532
      %v1534 = vrot.slane %v1529, %v1533
      %vm1536 = vcmask 293888
      %v1538 = vsel %vm1536, %v1516, 0
      %v1541 = vsel %vm1536, %v1517, 0
      %v1544 = vsel %vm1536, %v1518, 0
      %v1547 = vsel %vm1536, %v1519, 0
      %v1550 = vsel %vm1536, %v1520, 0
      %v1553 = vsel %vm1536, %v1521, 0
      %v1556 = vsel %vm1536, %v1522, 0
      %v1559 = vsel %vm1536, %v1523, 0
      %vm1561 = vcmask 1043456
      %v1563 = vsel %vm1561, %v1528, 0
      %1565 = vmatprep.subr.mxu0 0.0
      %1566 = vmatpush1.msra.mxu0 0.0
      %1567 = vmatprep.subr.mxu0 0.0
      %1568 = vmatpush1.msra.mxu0 0.0
      %1569 = vmatprep.subr.mxu0 0.0
      %1570 = vmatpush1.msra.mxu0 0.0
      %1571 = vmatprep.subr.mxu0 0.0
      %1572 = vmatpush1.msra.mxu0 0.0
      %1573 = vmatprep.subr.mxu0 0.0
      %1574 = vmatpush1.msra.mxu0 0.0
      %1575 = vmatprep.subr.mxu0 0.0
      %1576 = vmatpush1.msra.mxu0 0.0
      %1577 = vmatprep.subr.mxu0 0.0
      %1578 = vmatpush1.msra.mxu0 0.0
      %1579 = vmatprep.subr.mxu0 0.0
      %1580 = vmatpush1.msra.mxu0 0.0
      %1581 = vmatprep.subr.mxu0 0.0
      %1582 = vmatpush1.msra.mxu0 0.0
      %1583 = vmatprep.subr.mxu0 0.0
      %1584 = vmatpush1.msra.mxu0 0.0
      %1585 = vmatprep.subr.mxu0 0.0
      %1586 = vmatpush1.msra.mxu0 0.0
      %1587 = vmatprep.subr.mxu0 0.0
      %1588 = vmatpush1.msra.mxu0 %v1563
      %1589 = vmatprep.subr.mxu0 0.0
      %1590 = vmatpush1.msra.mxu0 %v1527
      %1591 = vmatprep.subr.mxu0 0.0
      %1592 = vmatpush1.msra.mxu0 %v1526
      %1593 = vmatprep.subr.mxu0 0.0
      %1594 = vmatpush1.msra.mxu0 %v1525
      %1595 = vmatprep.subr.mxu0 0.0
      %1596 = vmatpush1.msra.mxu0 %v1524
      %1597 = vmatprep.subr.mxu0 0.0
      %1598 = vmatpush2.msra.mxu0 0.0
      %1599 = vmatprep.subr.mxu0 0.0
      %1600 = vmatpush2.msra.mxu0 0.0
      %1601 = vmatprep.subr.mxu0 0.0
      %1602 = vmatpush2.msra.mxu0 0.0
      %1603 = vmatprep.subr.mxu0 0.0
      %1604 = vmatpush2.msra.mxu0 0.0
      %1605 = vmatprep.subr.mxu0 0.0
      %1606 = vmatpush2.msra.mxu0 0.0
      %1607 = vmatprep.subr.mxu0 0.0
      %1608 = vmatpush2.msra.mxu0 0.0
      %1609 = vmatprep.subr.mxu0 0.0
      %1610 = vmatpush2.msra.mxu0 0.0
      %1611 = vmatprep.subr.mxu0 0.0
      %1612 = vmatpush2.msra.mxu0 0.0
      %1613 = vmatprep.subr.mxu0 0.0
      %1614 = vmatpush2.msra.mxu0 0.0
      %1615 = vmatprep.subr.mxu0 0.0
      %1616 = vmatpush2.msra.mxu0 0.0
      %1617 = vmatprep.subr.mxu0 0.0
      %1618 = vmatpush2.msra.mxu0 0.0
      %1619 = vmatprep.subr.mxu0 0.0
      %1620 = vmatpush2.msra.mxu0 0.0
      %1621 = vmatprep.subr.mxu0 0.0
      %1622 = vmatpush2.msra.mxu0 0.0
      %1623 = vmatprep.subr.mxu0 0.0
      %1624 = vmatpush2.msra.mxu0 0.0
      %1625 = vmatprep.subr.mxu0 0.0
      %1626 = vmatpush2.msra.mxu0 0.0
      %1627 = vmatprep.subr.mxu0 0.0
      %1628 = vmatpush2.msra.mxu0 0.0
      %1629 = vmatprep.mubr.f32.mxu0 0.0
      %1630 = vmatmul.mubr.f32.gmra.mxu0 %v1538
      %v1631 = vpop.f32.mrf.mxu0
      %v1632 = vadd.f32 %v1534, %v1631
      %v1633 = vpop.f32.mrf.mxu0
      %1634 = vmatprep.mubr.f32.mxu0 0.0
      %1635 = vmatmul.mubr.f32.gmra.mxu0 %v1541
      %v1636 = vpop.f32.mrf.mxu0
      %v1637 = vadd.f32 %v1534, %v1636
      %v1638 = vpop.f32.mrf.mxu0
      %1639 = vmatprep.mubr.f32.mxu0 0.0
      %1640 = vmatmul.mubr.f32.gmra.mxu0 %v1544
      %v1641 = vpop.f32.mrf.mxu0
      %v1642 = vadd.f32 %v1534, %v1641
      %v1643 = vpop.f32.mrf.mxu0
      %1644 = vmatprep.mubr.f32.mxu0 0.0
      %1645 = vmatmul.mubr.f32.gmra.mxu0 %v1547
      %v1646 = vpop.f32.mrf.mxu0
      %v1647 = vadd.f32 %v1534, %v1646
      %v1648 = vpop.f32.mrf.mxu0
      %1649 = vmatprep.mubr.f32.mxu0 0.0
      %1650 = vmatmul.mubr.f32.gmra.mxu0 %v1550
      %v1651 = vpop.f32.mrf.mxu0
      %v1652 = vadd.f32 %v1534, %v1651
      %v1653 = vpop.f32.mrf.mxu0
      %1654 = vmatprep.mubr.f32.mxu0 0.0
      %1655 = vmatmul.mubr.f32.gmra.mxu0 %v1553
      %v1656 = vpop.f32.mrf.mxu0
      %v1657 = vadd.f32 %v1534, %v1656
      %v1658 = vpop.f32.mrf.mxu0
      %1659 = vmatprep.mubr.f32.mxu0 0.0
      %1660 = vmatmul.mubr.f32.gmra.mxu0 %v1556
      %v1661 = vpop.f32.mrf.mxu0
      %v1662 = vadd.f32 %v1534, %v1661
      %v1663 = vpop.f32.mrf.mxu0
      %1664 = vmatprep.mubr.f32.mxu0 0.0
      %1665 = vmatmul.mubr.f32.gmra.mxu0 %v1559
      %v1666 = vpop.f32.mrf.mxu0
      %v1667 = vadd.f32 %v1534, %v1666
      %v1668 = vpop.f32.mrf.mxu0
      %1669 = vdwg.mxu0
      %v1670 = vmax.f32 %v1632, 0.0
      %v1671 = vmax.f32 %v1637, 0.0
      %v1672 = vmax.f32 %v1642, 0.0
      %v1673 = vmax.f32 %v1647, 0.0
      %v1674 = vmax.f32 %v1652, 0.0
      %v1675 = vmax.f32 %v1657, 0.0
      %v1676 = vmax.f32 %v1662, 0.0
      %v1677 = vmax.f32 %v1667, 0.0
      %1678 = vst.msk [vmem:[#allocation3] sm:$0xff] %vm1461, 0.0
      %vm1679 = vcmask 58368
      %1680 = vst.msk [vmem:[#allocation3 + $0x8] sm:$0x3] %vm1679, 0.0
      %1681 = vst.msk [vmem:[#allocation3 + $0x10] sm:$0xff] %vm1461, 0.0
      %1682 = vst.msk [vmem:[#allocation3 + $0x18] sm:$0x3] %vm1679, 0.0
      %1683 = vst.msk [vmem:[#allocation3 + $0x20] sm:$0xff] %vm1461, 0.0
      %1684 = vst.msk [vmem:[#allocation3 + $0x28] sm:$0x3] %vm1679, 0.0
      %1685 = vst.msk [vmem:[#allocation3 + $0x30] sm:$0xff] %vm1461, 0.0
      %1686 = vst.msk [vmem:[#allocation3 + $0x38] sm:$0x3] %vm1679, 0.0
      %1687 = vst.msk [vmem:[#allocation3 + $0x40] sm:$0xff] %vm1461, 0.0
      %1688 = vst.msk [vmem:[#allocation3 + $0x48] sm:$0x3] %vm1679, 0.0
      %1689 = vst.msk [vmem:[#allocation3 + $0x50] sm:$0xff] %vm1461, 0.0
      %1690 = vst.msk [vmem:[#allocation3 + $0x58] sm:$0x3] %vm1679, 0.0
      %1691 = vst.msk [vmem:[#allocation3 + $0x60] sm:$0xff] %vm1461, 0.0
      %1692 = vst.msk [vmem:[#allocation3 + $0x68] sm:$0x3] %vm1679, 0.0
      %1693 = vst.msk [vmem:[#allocation3 + $0x70] sm:$0xff] %vm1461, 0.0
      %1694 = vst.msk [vmem:[#allocation3 + $0x78] sm:$0x3] %vm1679, 0.0
      %1695 = vst.msk [vmem:[#allocation3 + $0x80] sm:$0xff] %vm1461, 0.0
      %1696 = vst.msk [vmem:[#allocation3 + $0x88] sm:$0x3] %vm1679, 0.0
      %1697 = vst.msk [vmem:[#allocation3 + $0x90] sm:$0xff] %vm1461, 0.0
      %1698 = vst.msk [vmem:[#allocation3 + $0x98] sm:$0x3] %vm1679, 0.0
      %s1699 = scalar_lea.vmem [#allocation3], 16
      %1700 = vst.msk [vmem:[%s1699 + $0x1] sm:$0xff] %vm1461, %v1670
      %1701 = vst.msk [vmem:[%s1699 + $0x11] sm:$0xff] %vm1461, %v1671
      %1702 = vst.msk [vmem:[%s1699 + $0x21] sm:$0xff] %vm1461, %v1672
      %1703 = vst.msk [vmem:[%s1699 + $0x31] sm:$0xff] %vm1461, %v1673
      %1704 = vst.msk [vmem:[%s1699 + $0x41] sm:$0xff] %vm1461, %v1674
      %1705 = vst.msk [vmem:[%s1699 + $0x51] sm:$0xff] %vm1461, %v1675
      %1706 = vst.msk [vmem:[%s1699 + $0x61] sm:$0xff] %vm1461, %v1676
      %1707 = vst.msk [vmem:[%s1699 + $0x71] sm:$0xff] %vm1461, %v1677
      %v1708 = vld [vmem:[#allocation3] sm:$0xff]
      %v1709 = vld [vmem:[#allocation3 + $0x8] sm:$0x3]
      %v1710 = vld [vmem:[#allocation3 + $0x10] sm:$0xff]
      %v1711 = vld [vmem:[#allocation3 + $0x18] sm:$0x3]
      %v1712 = vld [vmem:[#allocation3 + $0x20] sm:$0xff]
      %v1713 = vld [vmem:[#allocation3 + $0x28] sm:$0x3]
      %v1714 = vld [vmem:[#allocation3 + $0x30] sm:$0xff]
      %v1715 = vld [vmem:[#allocation3 + $0x38] sm:$0x3]
      %v1716 = vld [vmem:[#allocation3 + $0x40] sm:$0xff]
      %v1717 = vld [vmem:[#allocation3 + $0x48] sm:$0x3]
      %v1718 = vld [vmem:[#allocation3 + $0x50] sm:$0xff]
      %v1719 = vld [vmem:[#allocation3 + $0x58] sm:$0x3]
      %v1720 = vld [vmem:[#allocation3 + $0x60] sm:$0xff]
      %v1721 = vld [vmem:[#allocation3 + $0x68] sm:$0x3]
      %v1722 = vld [vmem:[#allocation3 + $0x70] sm:$0xff]
      %v1723 = vld [vmem:[#allocation3 + $0x78] sm:$0x3]
      %v1724 = vld [vmem:[#allocation3 + $0x80] sm:$0xff]
      %v1725 = vld [vmem:[#allocation3 + $0x88] sm:$0x3]
      %v1726 = vld [vmem:[#allocation3 + $0x90] sm:$0xff]
      %v1727 = vld [vmem:[#allocation3 + $0x98] sm:$0x3]
      %v1744 = vrot.slane %v1708, 1
      %v1745 = vrot.slane %v1709, 1
      %v1746 = vsel %vm1195, %v1744, %v1745
      %v1747 = vrot.slane %v1710, 1
      %v1748 = vrot.slane %v1711, 1
      %v1749 = vsel %vm1195, %v1747, %v1748
      %v1750 = vrot.slane %v1712, 1
      %v1751 = vrot.slane %v1713, 1
      %v1752 = vsel %vm1195, %v1750, %v1751
      %v1753 = vrot.slane %v1714, 1
      %v1754 = vrot.slane %v1715, 1
      %v1755 = vsel %vm1195, %v1753, %v1754
      %v1756 = vrot.slane %v1716, 1
      %v1757 = vrot.slane %v1717, 1
      %v1758 = vsel %vm1195, %v1756, %v1757
      %v1759 = vrot.slane %v1718, 1
      %v1760 = vrot.slane %v1719, 1
      %v1761 = vsel %vm1195, %v1759, %v1760
      %v1762 = vrot.slane %v1720, 1
      %v1763 = vrot.slane %v1721, 1
      %v1764 = vsel %vm1195, %v1762, %v1763
      %v1765 = vrot.slane %v1722, 1
      %v1766 = vrot.slane %v1723, 1
      %v1767 = vsel %vm1195, %v1765, %v1766
      %1768 = vrot.lane.b32.xlu0 %v1746, 8
      %v1769 = vpop.permute.xlu0 %1768
      %1770 = vrot.lane.b32.xlu0 %v1749, 8
      %v1771 = vpop.permute.xlu0 %1770
      %1772 = vrot.lane.b32.xlu0 %v1752, 8
      %v1773 = vpop.permute.xlu0 %1772
      %1774 = vrot.lane.b32.xlu0 %v1755, 8
      %v1775 = vpop.permute.xlu0 %1774
      %1776 = vrot.lane.b32.xlu0 %v1758, 8
      %v1777 = vpop.permute.xlu0 %1776
      %1778 = vrot.lane.b32.xlu0 %v1761, 8
      %v1779 = vpop.permute.xlu0 %1778
      %1780 = vrot.lane.b32.xlu0 %v1764, 8
      %v1781 = vpop.permute.xlu0 %1780
      %1782 = vrot.lane.b32.xlu0 %v1767, 8
      %v1783 = vpop.permute.xlu0 %1782
      %v1792 = vrot.slane %v1708, 2
      %v1793 = vrot.slane %v1709, 2
      %v1794 = vsel %vm1244, %v1792, %v1793
      %v1795 = vrot.slane %v1710, 2
      %v1796 = vrot.slane %v1711, 2
      %v1797 = vsel %vm1244, %v1795, %v1796
      %v1798 = vrot.slane %v1712, 2
      %v1799 = vrot.slane %v1713, 2
      %v1800 = vsel %vm1244, %v1798, %v1799
      %v1801 = vrot.slane %v1714, 2
      %v1802 = vrot.slane %v1715, 2
      %v1803 = vsel %vm1244, %v1801, %v1802
      %v1804 = vrot.slane %v1716, 2
      %v1805 = vrot.slane %v1717, 2
      %v1806 = vsel %vm1244, %v1804, %v1805
      %v1807 = vrot.slane %v1718, 2
      %v1808 = vrot.slane %v1719, 2
      %v1809 = vsel %vm1244, %v1807, %v1808
      %v1810 = vrot.slane %v1720, 2
      %v1811 = vrot.slane %v1721, 2
      %v1812 = vsel %vm1244, %v1810, %v1811
      %v1813 = vrot.slane %v1722, 2
      %v1814 = vrot.slane %v1723, 2
      %v1815 = vsel %vm1244, %v1813, %v1814
      %1816 = vrot.lane.b32.xlu0 %v1794, 16
      %v1817 = vpop.permute.xlu0 %1816
      %1818 = vrot.lane.b32.xlu0 %v1797, 16
      %v1819 = vpop.permute.xlu0 %1818
      %1820 = vrot.lane.b32.xlu0 %v1800, 16
      %v1821 = vpop.permute.xlu0 %1820
      %1822 = vrot.lane.b32.xlu0 %v1803, 16
      %v1823 = vpop.permute.xlu0 %1822
      %1824 = vrot.lane.b32.xlu0 %v1806, 16
      %v1825 = vpop.permute.xlu0 %1824
      %1826 = vrot.lane.b32.xlu0 %v1809, 16
      %v1827 = vpop.permute.xlu0 %1826
      %1828 = vrot.lane.b32.xlu0 %v1812, 16
      %v1829 = vpop.permute.xlu0 %1828
      %1830 = vrot.lane.b32.xlu0 %v1815, 16
      %v1831 = vpop.permute.xlu0 %1830
      %1841 = vrot.lane.b32.xlu0 %v1710, 24
      %v1842 = vpop.permute.xlu0 %1841
      %1843 = vrot.lane.b32.xlu0 %v1712, 24
      %v1844 = vpop.permute.xlu0 %1843
      %1845 = vrot.lane.b32.xlu0 %v1714, 24
      %v1846 = vpop.permute.xlu0 %1845
      %1847 = vrot.lane.b32.xlu0 %v1716, 24
      %v1848 = vpop.permute.xlu0 %1847
      %1849 = vrot.lane.b32.xlu0 %v1718, 24
      %v1850 = vpop.permute.xlu0 %1849
      %1851 = vrot.lane.b32.xlu0 %v1720, 24
      %v1852 = vpop.permute.xlu0 %1851
      %1853 = vrot.lane.b32.xlu0 %v1722, 24
      %v1854 = vpop.permute.xlu0 %1853
      %1855 = vrot.lane.b32.xlu0 %v1724, 24
      %v1856 = vpop.permute.xlu0 %1855
      %v1866 = vrot.slane %v1724, 1
      %v1867 = vrot.slane %v1725, 1
      %v1868 = vsel %vm1195, %v1866, %v1867
      %1869 = vrot.lane.b32.xlu0 %v1749, 32
      %v1870 = vpop.permute.xlu0 %1869
      %1871 = vrot.lane.b32.xlu0 %v1752, 32
      %v1872 = vpop.permute.xlu0 %1871
      %1873 = vrot.lane.b32.xlu0 %v1755, 32
      %v1874 = vpop.permute.xlu0 %1873
      %1875 = vrot.lane.b32.xlu0 %v1758, 32
      %v1876 = vpop.permute.xlu0 %1875
      %1877 = vrot.lane.b32.xlu0 %v1761, 32
      %v1878 = vpop.permute.xlu0 %1877
      %1879 = vrot.lane.b32.xlu0 %v1764, 32
      %v1880 = vpop.permute.xlu0 %1879
      %1881 = vrot.lane.b32.xlu0 %v1767, 32
      %v1882 = vpop.permute.xlu0 %1881
      %1883 = vrot.lane.b32.xlu0 %v1868, 32
      %v1884 = vpop.permute.xlu0 %1883
      %v1893 = vrot.slane %v1724, 2
      %v1894 = vrot.slane %v1725, 2
      %v1895 = vsel %vm1244, %v1893, %v1894
      %1896 = vrot.lane.b32.xlu0 %v1797, 40
      %v1897 = vpop.permute.xlu0 %1896
      %1898 = vrot.lane.b32.xlu0 %v1800, 40
      %v1899 = vpop.permute.xlu0 %1898
      %1900 = vrot.lane.b32.xlu0 %v1803, 40
      %v1901 = vpop.permute.xlu0 %1900
      %1902 = vrot.lane.b32.xlu0 %v1806, 40
      %v1903 = vpop.permute.xlu0 %1902
      %1904 = vrot.lane.b32.xlu0 %v1809, 40
      %v1905 = vpop.permute.xlu0 %1904
      %1906 = vrot.lane.b32.xlu0 %v1812, 40
      %v1907 = vpop.permute.xlu0 %1906
      %1908 = vrot.lane.b32.xlu0 %v1815, 40
      %v1909 = vpop.permute.xlu0 %1908
      %1910 = vrot.lane.b32.xlu0 %v1895, 40
      %v1911 = vpop.permute.xlu0 %1910
      %1921 = vrot.lane.b32.xlu0 %v1712, 48
      %v1922 = vpop.permute.xlu0 %1921
      %1923 = vrot.lane.b32.xlu0 %v1714, 48
      %v1924 = vpop.permute.xlu0 %1923
      %1925 = vrot.lane.b32.xlu0 %v1716, 48
      %v1926 = vpop.permute.xlu0 %1925
      %1927 = vrot.lane.b32.xlu0 %v1718, 48
      %v1928 = vpop.permute.xlu0 %1927
      %1929 = vrot.lane.b32.xlu0 %v1720, 48
      %v1930 = vpop.permute.xlu0 %1929
      %1931 = vrot.lane.b32.xlu0 %v1722, 48
      %v1932 = vpop.permute.xlu0 %1931
      %1933 = vrot.lane.b32.xlu0 %v1724, 48
      %v1934 = vpop.permute.xlu0 %1933
      %1935 = vrot.lane.b32.xlu0 %v1726, 48
      %v1936 = vpop.permute.xlu0 %1935
      %v1946 = vrot.slane %v1726, 1
      %v1947 = vrot.slane %v1727, 1
      %v1948 = vsel %vm1195, %v1946, %v1947
      %1949 = vrot.lane.b32.xlu0 %v1752, 56
      %v1950 = vpop.permute.xlu0 %1949
      %1951 = vrot.lane.b32.xlu0 %v1755, 56
      %v1952 = vpop.permute.xlu0 %1951
      %1953 = vrot.lane.b32.xlu0 %v1758, 56
      %v1954 = vpop.permute.xlu0 %1953
      %1955 = vrot.lane.b32.xlu0 %v1761, 56
      %v1956 = vpop.permute.xlu0 %1955
      %1957 = vrot.lane.b32.xlu0 %v1764, 56
      %v1958 = vpop.permute.xlu0 %1957
      %1959 = vrot.lane.b32.xlu0 %v1767, 56
      %v1960 = vpop.permute.xlu0 %1959
      %1961 = vrot.lane.b32.xlu0 %v1868, 56
      %v1962 = vpop.permute.xlu0 %1961
      %1963 = vrot.lane.b32.xlu0 %v1948, 56
      %v1964 = vpop.permute.xlu0 %1963
      %v1973 = vrot.slane %v1726, 2
      %v1974 = vrot.slane %v1727, 2
      %v1975 = vsel %vm1244, %v1973, %v1974
      %1976 = vrot.lane.b32.xlu0 %v1800, 64
      %v1977 = vpop.permute.xlu0 %1976
      %1978 = vrot.lane.b32.xlu0 %v1803, 64
      %v1979 = vpop.permute.xlu0 %1978
      %1980 = vrot.lane.b32.xlu0 %v1806, 64
      %v1981 = vpop.permute.xlu0 %1980
      %1982 = vrot.lane.b32.xlu0 %v1809, 64
      %v1983 = vpop.permute.xlu0 %1982
      %1984 = vrot.lane.b32.xlu0 %v1812, 64
      %v1985 = vpop.permute.xlu0 %1984
      %1986 = vrot.lane.b32.xlu0 %v1815, 64
      %v1987 = vpop.permute.xlu0 %1986
      %1988 = vrot.lane.b32.xlu0 %v1895, 64
      %v1989 = vpop.permute.xlu0 %1988
      %1990 = vrot.lane.b32.xlu0 %v1975, 64
      %v1991 = vpop.permute.xlu0 %1990
      %v2000 = vsel %vm1461, %v1708, %v1769
      %v2001 = vsel %vm1461, %v1710, %v1771
      %v2002 = vsel %vm1461, %v1712, %v1773
      %v2003 = vsel %vm1461, %v1714, %v1775
      %v2004 = vsel %vm1461, %v1716, %v1777
      %v2005 = vsel %vm1461, %v1718, %v1779
      %v2006 = vsel %vm1461, %v1720, %v1781
      %v2007 = vsel %vm1461, %v1722, %v1783
      %v2008 = vsel %vm1479, %v2000, %v1817
      %v2009 = vsel %vm1479, %v2001, %v1819
      %v2010 = vsel %vm1479, %v2002, %v1821
      %v2011 = vsel %vm1479, %v2003, %v1823
      %v2012 = vsel %vm1479, %v2004, %v1825
      %v2013 = vsel %vm1479, %v2005, %v1827
      %v2014 = vsel %vm1479, %v2006, %v1829
      %v2015 = vsel %vm1479, %v2007, %v1831
      %v2016 = vsel %vm1497, %v2008, %v1842
      %v2017 = vsel %vm1497, %v2009, %v1844
      %v2018 = vsel %vm1497, %v2010, %v1846
      %v2019 = vsel %vm1497, %v2011, %v1848
      %v2020 = vsel %vm1497, %v2012, %v1850
      %v2021 = vsel %vm1497, %v2013, %v1852
      %v2022 = vsel %vm1497, %v2014, %v1854
      %v2023 = vsel %vm1497, %v2015, %v1856
      %v2024 = vsel %vm1515, %v2016, %v1870
      %v2025 = vsel %vm1515, %v2017, %v1872
      %v2026 = vsel %vm1515, %v2018, %v1874
      %v2027 = vsel %vm1515, %v2019, %v1876
      %v2028 = vsel %vm1515, %v2020, %v1878
      %v2029 = vsel %vm1515, %v2021, %v1880
      %v2030 = vsel %vm1515, %v2022, %v1882
      %v2031 = vsel %vm1515, %v2023, %v1884
      %vm2032 = vcmask 326656
      %v2033 = vsel %vm2032, %v2024, %v1897
      %v2034 = vsel %vm2032, %v2025, %v1899
      %v2035 = vsel %vm2032, %v2026, %v1901
      %v2036 = vsel %vm2032, %v2027, %v1903
      %v2037 = vsel %vm2032, %v2028, %v1905
      %v2038 = vsel %vm2032, %v2029, %v1907
      %v2039 = vsel %vm2032, %v2030, %v1909
      %v2040 = vsel %vm2032, %v2031, %v1911
      %vm2041 = vcmask 392192
      %v2042 = vsel %vm2041, %v2033, %v1922
      %v2043 = vsel %vm2041, %v2034, %v1924
      %v2044 = vsel %vm2041, %v2035, %v1926
      %v2045 = vsel %vm2041, %v2036, %v1928
      %v2046 = vsel %vm2041, %v2037, %v1930
      %v2047 = vsel %vm2041, %v2038, %v1932
      %v2048 = vsel %vm2041, %v2039, %v1934
      %v2049 = vsel %vm2041, %v2040, %v1936
      %vm2050 = vcmask 457728
      %v2051 = vsel %vm2050, %v2042, %v1950
      %v2052 = vsel %vm2050, %v2043, %v1952
      %v2053 = vsel %vm2050, %v2044, %v1954
      %v2054 = vsel %vm2050, %v2045, %v1956
      %v2055 = vsel %vm2050, %v2046, %v1958
      %v2056 = vsel %vm2050, %v2047, %v1960
      %v2057 = vsel %vm2050, %v2048, %v1962
      %v2058 = vsel %vm2050, %v2049, %v1964
      %vm2059 = vcmask 523264
      %v2060 = vsel %vm2059, %v2051, %v1977
      %v2061 = vsel %vm2059, %v2052, %v1979
      %v2062 = vsel %vm2059, %v2053, %v1981
      %v2063 = vsel %vm2059, %v2054, %v1983
      %v2064 = vsel %vm2059, %v2055, %v1985
      %v2065 = vsel %vm2059, %v2056, %v1987
      %v2066 = vsel %vm2059, %v2057, %v1989
      %v2067 = vsel %vm2059, %v2058, %v1991
      %v2068 = vld [vmem:[%s3] sm:$0xff]
      %v2069 = vld [vmem:[%s3 + $0x8] sm:$0xff]
      %v2070 = vld [vmem:[%s3 + $0x10] sm:$0xff]
      %v2071 = vld [vmem:[%s3 + $0x18] sm:$0xff]
      %v2072 = vld [vmem:[%s3 + $0x20] sm:$0xff]
      %v2073 = vld [vmem:[%s3 + $0x28] sm:$0xff]
      %v2074 = vld [vmem:[%s3 + $0x30] sm:$0xff]
      %v2075 = vld [vmem:[%s3 + $0x38] sm:$0xff]
      %v2076 = vld [vmem:[%s3 + $0x40] sm:$0xff]
      %v2077 = vld [vmem:[%s4] sm:$0x1]
      %v2079 = vlaneseq
      %v2080 = vshrl.u32 %v2079, 7
      %v2081 = vsub.s32 0, %v2080
      %v2082 = vrot.slane %v2077, %v2081
      %vm2084 = vcmask 588800
      %v2086 = vsel %vm2084, %v2060, 0
      %v2089 = vsel %vm2084, %v2061, 0
      %v2092 = vsel %vm2084, %v2062, 0
      %v2095 = vsel %vm2084, %v2063, 0
      %v2098 = vsel %vm2084, %v2064, 0
      %v2101 = vsel %vm2084, %v2065, 0
      %v2104 = vsel %vm2084, %v2066, 0
      %v2107 = vsel %vm2084, %v2067, 0
      %2109 = vmatprep.subr.mxu0 0.0
      %2110 = vmatpush1.msra.mxu0 0.0
      %2111 = vmatprep.subr.mxu0 0.0
      %2112 = vmatpush1.msra.mxu0 0.0
      %2113 = vmatprep.subr.mxu0 0.0
      %2114 = vmatpush1.msra.mxu0 0.0
      %2115 = vmatprep.subr.mxu0 0.0
      %2116 = vmatpush1.msra.mxu0 0.0
      %2117 = vmatprep.subr.mxu0 0.0
      %2118 = vmatpush1.msra.mxu0 0.0
      %2119 = vmatprep.subr.mxu0 0.0
      %2120 = vmatpush1.msra.mxu0 0.0
      %2121 = vmatprep.subr.mxu0 0.0
      %2122 = vmatpush1.msra.mxu0 0.0
      %2123 = vmatprep.subr.mxu0 0.0
      %2124 = vmatpush1.msra.mxu0 %v2076
      %2125 = vmatprep.subr.mxu0 0.0
      %2126 = vmatpush1.msra.mxu0 %v2075
      %2127 = vmatprep.subr.mxu0 0.0
      %2128 = vmatpush1.msra.mxu0 %v2074
      %2129 = vmatprep.subr.mxu0 0.0
      %2130 = vmatpush1.msra.mxu0 %v2073
      %2131 = vmatprep.subr.mxu0 0.0
      %2132 = vmatpush1.msra.mxu0 %v2072
      %2133 = vmatprep.subr.mxu0 0.0
      %2134 = vmatpush1.msra.mxu0 %v2071
      %2135 = vmatprep.subr.mxu0 0.0
      %2136 = vmatpush1.msra.mxu0 %v2070
      %2137 = vmatprep.subr.mxu0 0.0
      %2138 = vmatpush1.msra.mxu0 %v2069
      %2139 = vmatprep.subr.mxu0 0.0
      %2140 = vmatpush1.msra.mxu0 %v2068
      %2141 = vmatprep.subr.mxu0 0.0
      %2142 = vmatpush2.msra.mxu0 0.0
      %2143 = vmatprep.subr.mxu0 0.0
      %2144 = vmatpush2.msra.mxu0 0.0
      %2145 = vmatprep.subr.mxu0 0.0
      %2146 = vmatpush2.msra.mxu0 0.0
      %2147 = vmatprep.subr.mxu0 0.0
      %2148 = vmatpush2.msra.mxu0 0.0
      %2149 = vmatprep.subr.mxu0 0.0
      %2150 = vmatpush2.msra.mxu0 0.0
      %2151 = vmatprep.subr.mxu0 0.0
      %2152 = vmatpush2.msra.mxu0 0.0
      %2153 = vmatprep.subr.mxu0 0.0
      %2154 = vmatpush2.msra.mxu0 0.0
      %2155 = vmatprep.subr.mxu0 0.0
      %2156 = vmatpush2.msra.mxu0 0.0
      %2157 = vmatprep.subr.mxu0 0.0
      %2158 = vmatpush2.msra.mxu0 0.0
      %2159 = vmatprep.subr.mxu0 0.0
      %2160 = vmatpush2.msra.mxu0 0.0
      %2161 = vmatprep.subr.mxu0 0.0
      %2162 = vmatpush2.msra.mxu0 0.0
      %2163 = vmatprep.subr.mxu0 0.0
      %2164 = vmatpush2.msra.mxu0 0.0
      %2165 = vmatprep.subr.mxu0 0.0
      %2166 = vmatpush2.msra.mxu0 0.0
      %2167 = vmatprep.subr.mxu0 0.0
      %2168 = vmatpush2.msra.mxu0 0.0
      %2169 = vmatprep.subr.mxu0 0.0
      %2170 = vmatpush2.msra.mxu0 0.0
      %2171 = vmatprep.subr.mxu0 0.0
      %2172 = vmatpush2.msra.mxu0 0.0
      %2173 = vmatprep.mubr.f32.mxu0 0.0
      %2174 = vmatmul.mubr.f32.gmra.mxu0 %v2086
      %v2175 = vpop.f32.mrf.mxu0
      %v2176 = vadd.f32 %v2082, %v2175
      %v2177 = vpop.f32.mrf.mxu0
      %2178 = vmatprep.mubr.f32.mxu0 0.0
      %2179 = vmatmul.mubr.f32.gmra.mxu0 %v2089
      %v2180 = vpop.f32.mrf.mxu0
      %v2181 = vadd.f32 %v2082, %v2180
      %v2182 = vpop.f32.mrf.mxu0
      %2183 = vmatprep.mubr.f32.mxu0 0.0
      %2184 = vmatmul.mubr.f32.gmra.mxu0 %v2092
      %v2185 = vpop.f32.mrf.mxu0
      %v2186 = vadd.f32 %v2082, %v2185
      %v2187 = vpop.f32.mrf.mxu0
      %2188 = vmatprep.mubr.f32.mxu0 0.0
      %2189 = vmatmul.mubr.f32.gmra.mxu0 %v2095
      %v2190 = vpop.f32.mrf.mxu0
      %v2191 = vadd.f32 %v2082, %v2190
      %v2192 = vpop.f32.mrf.mxu0
      %2193 = vmatprep.mubr.f32.mxu0 0.0
      %2194 = vmatmul.mubr.f32.gmra.mxu0 %v2098
      %v2195 = vpop.f32.mrf.mxu0
      %v2196 = vadd.f32 %v2082, %v2195
      %v2197 = vpop.f32.mrf.mxu0
      %2198 = vmatprep.mubr.f32.mxu0 0.0
      %2199 = vmatmul.mubr.f32.gmra.mxu0 %v2101
      %v2200 = vpop.f32.mrf.mxu0
      %v2201 = vadd.f32 %v2082, %v2200
      %v2202 = vpop.f32.mrf.mxu0
      %2203 = vmatprep.mubr.f32.mxu0 0.0
      %2204 = vmatmul.mubr.f32.gmra.mxu0 %v2104
      %v2205 = vpop.f32.mrf.mxu0
      %v2206 = vadd.f32 %v2082, %v2205
      %v2207 = vpop.f32.mrf.mxu0
      %2208 = vmatprep.mubr.f32.mxu0 0.0
      %2209 = vmatmul.mubr.f32.gmra.mxu0 %v2107
      %v2210 = vpop.f32.mrf.mxu0
      %v2211 = vadd.f32 %v2082, %v2210
      %v2212 = vpop.f32.mrf.mxu0
      %2213 = vdwg.mxu0
      %v2214 = vmax.f32 %v2176, 0.0
      %v2215 = vmax.f32 %v2181, 0.0
      %v2216 = vmax.f32 %v2186, 0.0
      %v2217 = vmax.f32 %v2191, 0.0
      %v2218 = vmax.f32 %v2196, 0.0
      %v2219 = vmax.f32 %v2201, 0.0
      %v2220 = vmax.f32 %v2206, 0.0
      %v2221 = vmax.f32 %v2211, 0.0
      %2222 = vst.msk [vmem:[%s224] sm:$0xff] %vm1461, %v2214
      %2223 = vst.msk [vmem:[%s224 + $0x8] sm:$0xff] %vm1461, %v2215
      %2224 = vst.msk [vmem:[%s224 + $0x10] sm:$0xff] %vm1461, %v2216
      %2225 = vst.msk [vmem:[%s224 + $0x18] sm:$0xff] %vm1461, %v2217
      %2226 = vst.msk [vmem:[%s224 + $0x20] sm:$0xff] %vm1461, %v2218
      %2227 = vst.msk [vmem:[%s224 + $0x28] sm:$0xff] %vm1461, %v2219
      %2228 = vst.msk [vmem:[%s224 + $0x30] sm:$0xff] %vm1461, %v2220
      %2229 = vst.msk [vmem:[%s224 + $0x38] sm:$0xff] %vm1461, %v2221
      %p2230 = scmp.lt.s32.totalorder %s16, 1
      %s2231 = scalar_select %p2230, %s16, 1
      %s2232 = smul.addr %s2231, 8
      %s2233 = smul.addr %s2232, 8
      %s2234 = scalar_lea.vmem %s5, %s2233
      // Predicated region
      $region41: #{tpu_custom_call.1} parent=39 // pred_check
        %p2235 = pneg %p144
      $region42: #{tpu_custom_call.1} parent=39 // pred_check_branch
        %2237 = sbr.rel (%p2235) target = $region44
      $region43: #{tpu_custom_call.1} parent=39 // pred_region
        _
      $region44: #{tpu_custom_call.1} parent=39 // pred_fallthru
        _
    $region40: #{tpu_custom_call.1} parent=5 // pred_fallthru
      _
    %p2238 = scmp.le.s32.totalorder 2, %s11
    // Predicated region
    $region45: #{tpu_custom_call.1} parent=5 // pred_check
      %p2239 = pneg %p2238
    $region46: #{tpu_custom_call.1} parent=5 // pred_check_branch
      %2241 = sbr.rel (%p2239) target = $region48
    $region47: #{tpu_custom_call.1} parent=5 // pred_region
      %s2242 = ssub.s32 %s11, 2
      // Predicated region
      $region49: #{tpu_custom_call.1} parent=47 // pred_check
        %p2243 = pneg %p150
      $region50: #{tpu_custom_call.1} parent=47 // pred_check_branch
        %2245 = sbr.rel (%p2243) target = $region52
      $region51: #{tpu_custom_call.1} parent=47 // pred_region
        %p2246 = scmp.lt.s32.totalorder %s17, 1
        %s2247 = scalar_select %p2246, %s17, 1
        %s2248 = smul.addr %s2247, 8
        %s2249 = smul.addr %s2248, 8
        %s2250 = scalar_lea.vmem %s5, %s2249
      $region52: #{tpu_custom_call.1} parent=47 // pred_fallthru
        _
    $region48: #{tpu_custom_call.1} parent=5 // pred_fallthru
      _
  $region6: #{tpu_custom_call.1} parent=0 // loop_footer
    %s15 = sadd.s32 1, %s11
  $region7: #{tpu_custom_call.1} parent=0 // loop_footer_branch
    %10 = sbr.rel target = $region3
  $region8: #{tpu_custom_call.1} parent=0 // loop_exit
    _

</llo_original>
